<compile_context>
chip_gen: v7x
topology: tpu7x:2x2x1
jax: 0.10.0
libtpu: 0.0.40
codegen_flags: <defaults>
</compile_context>

<pallas_src>
import jax
import jax.numpy as jnp
import numpy as np
from jax.experimental import pallas as pl
from jax.experimental.pallas import tpu as pltpu

LN_EPS = 1e-5       # torch.nn.LayerNorm default eps
NORM_EPS = 1e-3     # epsilon in the module's forward


# ---------------------------------------------------------------------------
# Kernel A: input LayerNorm + fused, masked left/right projections.
# Operates on rows of the flattened MSA tensor (S*R, c_m); writes bf16 outputs.
# ---------------------------------------------------------------------------
def _ln_proj_kernel(act_ref, mask_ref, g_ref, b_ref, w_ref, wb_ref,
                    left_ref, right_ref):
    # Upcast in-kernel (act may be bf16 in real pipelines); LN statistics in f32.
    x = act_ref[...].astype(jnp.float32)                           # (TR, M)
    mu = jnp.mean(x, axis=-1, keepdims=True)
    var = jnp.mean(jnp.square(x - mu), axis=-1, keepdims=True)
    xn = (x - mu) * jax.lax.rsqrt(var + LN_EPS)
    xn = xn * g_ref[...] + b_ref[...]                              # (1, M) broadcast

    # Fused [left | right] projection: one (M, 2C) matmul instead of two (M, C).
    proj = jnp.dot(xn, w_ref[...], preferred_element_type=jnp.float32) + wb_ref[...]
    proj = proj * mask_ref[...]                                    # (TR, 1) broadcast

    C = left_ref.shape[-1]
    left_ref[...] = proj[:, :C].astype(left_ref.dtype)             # bf16 stores
    right_ref[...] = proj[:, C:].astype(right_ref.dtype)
    # TODO(synk): emit these directly in the lane-dense (S, R*C) layout (sublane->lane
    # merge on the XLU) to avoid the C-wide masked stores flagged in the review.


# ---------------------------------------------------------------------------
# Fused Kernel B: outer-product reduction over N_seq + output projection +
# mask-count normalisation, all in one pass.
#   acc[(b,c),(d,e)] = sum_a L2[a, b*C+c] * R2[a, d*C+e]     (MXU, bf16 x bf16 -> f32)
#   epilogue (last k step): relayout acc -> p[(b,d),(e,c)], one K=C*C MXU matmul
#   with output_w, add bias, scale by 1/(eps + mask count), store (TB, TD, F) block.
# Grid: (b-tiles, d-tiles, seq-chunks); reduction axis last / "arbitrary".
# ---------------------------------------------------------------------------
def _outer_project_kernel(l_ref, r_ref, w2_ref, bias_ref, invn_ref,
                          out_ref, acc_ref, t_ref, p_ref):
    k = pl.program_id(2)

    @pl.when(k == 0)
    def _():
        acc_ref[...] = jnp.zeros_like(acc_ref)

    # Contract the sequence axis (dim 0 of both operands).
    # TODO(synk): confirm via pl.lower_as_mlir that this lowers without a per-step
    # vxpose of the L tile; if it does, have Kernel A emit L pre-transposed.
    acc_ref[...] += jax.lax.dot_general(
        l_ref[...], r_ref[...],
        dimension_numbers=(((0,), (0,)), ((), ())),
        preferred_element_type=jnp.float32)

    @pl.when(k == pl.num_programs(2) - 1)
    def _():
        TB, TD, F = out_ref.shape
        C = t_ref.shape[-1]

        # Relayout acc[(b,c),(d,e)] -> p[b*TD + d, e*C + c], once per output tile
        # (amortised over the whole N_seq reduction): one 2-D transpose per b
        # row-group plus sublane-strided reads.
        for bb in range(TB):                                       # static unroll
            t_ref[...] = acc_ref[pl.ds(bb * C, C), :].T            # (TD*C, C): rows (d,e), cols c
            for e in range(C):                                     # static unroll
                p_ref[pl.ds(bb * TD, TD), pl.ds(e * C, C)] = (
                    t_ref[pl.ds(e, TD, stride=C), :])              # (TD, C): rows d, cols c

        # Single K = C*C output projection on the MXU, kept in f32.
        proj = jnp.dot(p_ref[...], w2_ref[...],
                       preferred_element_type=jnp.float32)         # (TB*TD, F)
        proj = proj + bias_ref[...]                                # (1, F) broadcast

        for bb in range(TB):                                       # static unroll
            out_ref[bb] = (proj[bb * TD:(bb + 1) * TD, :]
                           * invn_ref[bb]).astype(out_ref.dtype)   # (TD,1) broadcast


# ---------------------------------------------------------------------------
# Wrapper: all activation reshapes below are contiguous row-major splits/merges
# (metadata only); there are no XLA transposes of activations between kernels.
# ---------------------------------------------------------------------------
def outer_product_mean(act, mask, params, *,
                       tile_rows=512, tile_m=256, tile_n=512, tile_k=512):
    S, R, M = act.shape
    C = params['wl'].shape[1]
    F = params['output_b'].shape[-1]
    NN = S * R
    RC = R * C

    # ---- Kernel A: LayerNorm + fused masked projections ----
    act2 = act.reshape(NN, M)                        # free reshape, native dtype
    mask2 = mask.reshape(NN, 1).astype(jnp.float32)
    # TODO(synk): mask is fetched as a 1-lane-wide block per step; pack it with act
    # (or widen it) to remove the per-step micro-DMA.

    TR = min(tile_rows, NN)
    assert NN % TR == 0, "N_seq*N_res must be divisible by tile_rows"
    # TODO(synk): add pl.cdiv + masking for non-divisible shapes.

    w_lr = jnp.concatenate([params['wl'], params['wr']], axis=1)    # (M, 2C)
    b_lr = jnp.concatenate([params['bl'], params['br']], axis=1)    # (1, 2C)

    left, right = pl.pallas_call(
        _ln_proj_kernel,
        grid=(NN // TR,),
        in_specs=[
            pl.BlockSpec((TR, M), lambda i: (i, 0)),
            pl.BlockSpec((TR, 1), lambda i: (i, 0)),
            pl.BlockSpec((1, M), lambda i: (0, 0)),
            pl.BlockSpec((1, M), lambda i: (0, 0)),
            pl.BlockSpec((M, 2 * C), lambda i: (0, 0)),
            pl.BlockSpec((1, 2 * C), lambda i: (0, 0)),
        ],
        out_specs=[
            pl.BlockSpec((TR, C), lambda i: (i, 0)),
            pl.BlockSpec((TR, C), lambda i: (i, 0)),
        ],
        out_shape=(jax.ShapeDtypeStruct((NN, C), jnp.bfloat16),
                   jax.ShapeDtypeStruct((NN, C), jnp.bfloat16)),
        compiler_params=pltpu.CompilerParams(dimension_semantics=("parallel",)),
    )(act2, mask2, params['ln_g'], params['ln_b'], w_lr, b_lr)

    # (NN, C) -> (S, R*C): contiguous merge, zero data movement; Kernel B reads these
    # with >=128-wide lane-dense blocks.
    L2 = left.reshape(S, RC)
    R2 = right.reshape(S, RC)

    # ---- Fused Kernel B: outer product + projection + normalisation ----
    tm = min(tile_m, RC)
    tn = min(tile_n, RC)
    tk = min(tile_k, S)
    assert RC % tm == 0 and RC % tn == 0 and S % tk == 0
    assert tm % C == 0 and tn % C == 0
    TB, TD = tm // C, tn // C                        # residues per tile on each side

    # Mask-count normalisation (tiny R x R x S einsum; pure glue) + weight prep.
    maskf = mask.astype(jnp.float32)
    norm = jnp.einsum('ab,ad->bd', maskf, maskf)                    # (R, R)
    inv_norm = (1.0 / (NORM_EPS + norm)).reshape(R, R, 1)           # (R, R, 1)

    # w2[e*C + c, f] = output_w[c, e, f]  (matches the in-kernel (e, c) column order).
    w2 = jnp.transpose(params['output_w'], (1, 0, 2)).reshape(C * C, F)

    out = pl.pallas_call(
        _outer_project_kernel,
        grid=(RC // tm, RC // tn, S // tk),
        in_specs=[
            pl.BlockSpec((tk, tm), lambda i, j, k: (k, i)),
            pl.BlockSpec((tk, tn), lambda i, j, k: (k, j)),
            pl.BlockSpec((C * C, F), lambda i, j, k: (0, 0)),
            pl.BlockSpec((1, F), lambda i, j, k: (0, 0)),
            pl.BlockSpec((TB, TD, 1), lambda i, j, k: (i, j, 0)),
        ],
        out_specs=pl.BlockSpec((TB, TD, F), lambda i, j, k: (i, j, 0)),
        out_shape=jax.ShapeDtypeStruct((R, R, F), jnp.float32),
        scratch_shapes=[
            pltpu.VMEM((tm, tn), jnp.float32),            # f32 outer-product accumulator
            pltpu.VMEM((tn, C), jnp.float32),             # per-row-group transpose buffer
            pltpu.VMEM((TB * TD, C * C), jnp.float32),    # (b*d, e*c) relayout buffer
        ],
        compiler_params=pltpu.CompilerParams(
            dimension_semantics=("parallel", "parallel", "arbitrary")),
        # TODO(synk): for AF2-scale shapes grow tile_m/tile_n/tile_k further and set
        # pltpu.CompilerParams(vmem_limit_bytes=...) if the scoped default is exceeded.
    )(L2, R2, w2, params['output_b'], inv_norm)

    return out                                                      # [N_res, N_res, c_z]


# ---------------------------------------------------------------------------
# Deterministic synthetic parameters (linears stored as (in, out) for x @ W + b)
# ---------------------------------------------------------------------------
def init_params(key, c_m, C, F):
    ks = jax.random.split(key, 8)

    def w(k, shape, scale=0.1):
        return scale * jax.random.normal(k, shape, dtype=jnp.float32)

    return dict(
        ln_g=jnp.ones((1, c_m), jnp.float32) + w(ks[0], (1, c_m), 0.05),
        ln_b=w(ks[1], (1, c_m)),
        wl=w(ks[2], (c_m, C)), bl=w(ks[3], (1, C)),
        wr=w(ks[4], (c_m, C)), br=w(ks[5], (1, C)),
        output_w=w(ks[6], (C, C, F)),
        output_b=w(ks[7], (1, F)),
    )


# Pure-JAX f32 reference (mirrors the PyTorch forward exactly)
def reference(act, mask, p):
    mu = jnp.mean(act, axis=-1, keepdims=True)
    var = jnp.mean(jnp.square(act - mu), axis=-1, keepdims=True)
    x = (act - mu) * jax.lax.rsqrt(var + LN_EPS) * p['ln_g'][0] + p['ln_b'][0]
    m = mask[..., None].astype(jnp.float32)
    left = m * (x @ p['wl'] + p['bl'][0])
    right = m * (x @ p['wr'] + p['br'][0])
    o = jnp.einsum('abc,ade->bdce', left, right)
    out = jnp.einsum('bdce,cef->bdf', o, p['output_w']) + p['output_b'][0]
    maskf = mask.astype(jnp.float32)
    norm = jnp.einsum('ab,ad->bd', maskf, maskf)
    return out / (NORM_EPS + norm[..., None])


if __name__ == "__main__":
    key = jax.random.PRNGKey(0)
    S, R, M = 64, 32, 32          # N_seq, N_res, c_m
    C, F = 8, 16                  # num_outer_channel, num_output_channel (c_z)

    k_act, k_mask, k_par = jax.random.split(key, 3)
    act = jax.random.normal(k_act, (S, R, M), dtype=jnp.float32)
    mask = (jax.random.uniform(k_mask, (S, R)) > 0.15).astype(jnp.float32)
    params = init_params(k_par, M, C, F)

    # Small tiles so every grid axis has >=2 steps (rows: 4, b-tiles: 2, d-tiles: 2,
    # seq reduction: 2) and the fused epilogue path is exercised.
    out = outer_product_mean(act, mask, params,
                             tile_rows=512, tile_m=128, tile_n=128, tile_k=32)
    out = jax.block_until_ready(out)

    ref = reference(act, mask, params)
    # bf16 left/right operands with f32 accumulation end-to-end.
    np.testing.assert_allclose(np.asarray(out), np.asarray(ref),
                               atol=2e-2, rtol=2e-2)
    print("KERNEL_OK")
</pallas_src>

<mosaic_0001>
module attributes {stable_mosaic.version = 11 : i64} {
  func.func @_ln_proj_kernel(%arg0: i32, %arg1: memref<512x32xf32, #tpu.memory_space<vmem>>, %arg2: memref<512x1xf32, #tpu.memory_space<vmem>>, %arg3: memref<1x32xf32, #tpu.memory_space<vmem>>, %arg4: memref<1x32xf32, #tpu.memory_space<vmem>>, %arg5: memref<32x16xf32, #tpu.memory_space<vmem>>, %arg6: memref<1x16xf32, #tpu.memory_space<vmem>>, %arg7: memref<512x8xbf16, #tpu.memory_space<vmem>>, %arg8: memref<512x8xbf16, #tpu.memory_space<vmem>>) attributes {dimension_semantics = [#tpu.dimension_semantics<parallel>], iteration_bounds = array<i64: 4>, scalar_prefetch = 0 : i64, scratch_operands = 0 : i64, tpu.core_type = #tpu.core_type<tc>, window_params = [{transform_indices = @transform_0, window_bounds = array<i64: 512, 32>}, {transform_indices = @transform_1, window_bounds = array<i64: 512, 1>}, {pipeline_mode = #tpu.pipeline_mode<synchronous>, transform_indices = @transform_2, window_bounds = array<i64: 1, 32>}, {pipeline_mode = #tpu.pipeline_mode<synchronous>, transform_indices = @transform_3, window_bounds = array<i64: 1, 32>}, {pipeline_mode = #tpu.pipeline_mode<synchronous>, transform_indices = @transform_4, window_bounds = array<i64: 32, 16>}, {pipeline_mode = #tpu.pipeline_mode<synchronous>, transform_indices = @transform_5, window_bounds = array<i64: 1, 16>}, {transform_indices = @transform_6, window_bounds = array<i64: 512, 8>}, {transform_indices = @transform_7, window_bounds = array<i64: 512, 8>}]} {
    %c0 = arith.constant 0 : index
    %c0_0 = arith.constant 0 : index
    %0 = vector.load %arg1[%c0, %c0_0] : memref<512x32xf32, #tpu.memory_space<vmem>>, vector<512x32xf32>
    %cst = arith.constant dense<0.000000e+00> : vector<512xf32>
    %1 = vector.multi_reduction <add>, %0, %cst [1] : vector<512x32xf32> to vector<512xf32>
    %2 = vector.shape_cast %1 : vector<512xf32> to vector<512x1xf32>
    %cst_1 = arith.constant 3.200000e+01 : f32
    %3 = vector.broadcast %cst_1 : f32 to vector<512x1xf32>
    %4 = arith.divf %2, %3 : vector<512x1xf32>
    %5 = vector.broadcast %4 : vector<512x1xf32> to vector<512x32xf32>
    %6 = arith.subf %0, %5 : vector<512x32xf32>
    %7 = arith.mulf %6, %6 : vector<512x32xf32>
    %cst_2 = arith.constant dense<0.000000e+00> : vector<512xf32>
    %8 = vector.multi_reduction <add>, %7, %cst_2 [1] : vector<512x32xf32> to vector<512xf32>
    %9 = vector.shape_cast %8 : vector<512xf32> to vector<512x1xf32>
    %cst_3 = arith.constant 3.200000e+01 : f32
    %10 = vector.broadcast %cst_3 : f32 to vector<512x1xf32>
    %11 = arith.divf %9, %10 : vector<512x1xf32>
    %12 = vector.broadcast %4 : vector<512x1xf32> to vector<512x32xf32>
    %13 = arith.subf %0, %12 : vector<512x32xf32>
    %cst_4 = arith.constant 9.99999974E-6 : f32
    %14 = vector.broadcast %cst_4 : f32 to vector<512x1xf32>
    %15 = arith.addf %11, %14 : vector<512x1xf32>
    %16 = math.rsqrt %15 : vector<512x1xf32>
    %17 = vector.broadcast %16 : vector<512x1xf32> to vector<512x32xf32>
    %18 = arith.mulf %13, %17 : vector<512x32xf32>
    %c0_5 = arith.constant 0 : index
    %c0_6 = arith.constant 0 : index
    %19 = vector.load %arg3[%c0_5, %c0_6] : memref<1x32xf32, #tpu.memory_space<vmem>>, vector<1x32xf32>
    %20 = vector.broadcast %19 : vector<1x32xf32> to vector<512x32xf32>
    %21 = arith.mulf %18, %20 : vector<512x32xf32>
    %c0_7 = arith.constant 0 : index
    %c0_8 = arith.constant 0 : index
    %22 = vector.load %arg4[%c0_7, %c0_8] : memref<1x32xf32, #tpu.memory_space<vmem>>, vector<1x32xf32>
    %23 = vector.broadcast %22 : vector<1x32xf32> to vector<512x32xf32>
    %24 = arith.addf %21, %23 : vector<512x32xf32>
    %c0_9 = arith.constant 0 : index
    %c0_10 = arith.constant 0 : index
    %25 = vector.load %arg5[%c0_9, %c0_10] : memref<32x16xf32, #tpu.memory_space<vmem>>, vector<32x16xf32>
    %cst_11 = arith.constant dense<0.000000e+00> : vector<512x16xf32>
    %26 = tpu.matmul %24, %25, %cst_11 {dimension_numbers = #tpu.dot_dimension_numbers<[1], [0], [0], [1], [0, 0, 1, 1], [], []>} : vector<512x32xf32>, vector<32x16xf32>, vector<512x16xf32> -> vector<512x16xf32>
    %c0_12 = arith.constant 0 : index
    %c0_13 = arith.constant 0 : index
    %27 = vector.load %arg6[%c0_12, %c0_13] : memref<1x16xf32, #tpu.memory_space<vmem>>, vector<1x16xf32>
    %28 = vector.broadcast %27 : vector<1x16xf32> to vector<512x16xf32>
    %29 = arith.addf %26, %28 : vector<512x16xf32>
    %c0_14 = arith.constant 0 : index
    %c0_15 = arith.constant 0 : index
    %30 = vector.load %arg2[%c0_14, %c0_15] : memref<512x1xf32, #tpu.memory_space<vmem>>, vector<512x1xf32>
    %31 = vector.broadcast %30 : vector<512x1xf32> to vector<512x16xf32>
    %32 = arith.mulf %29, %31 : vector<512x16xf32>
    %33 = vector.extract_strided_slice %32 {offsets = [0, 0], sizes = [512, 8], strides = [1, 1]} : vector<512x16xf32> to vector<512x8xf32>
    %34 = arith.truncf %33 : vector<512x8xf32> to vector<512x8xbf16>
    %c0_16 = arith.constant 0 : index
    %c0_17 = arith.constant 0 : index
    %35 = vector.load %arg7[%c0_16, %c0_17] : memref<512x8xbf16, #tpu.memory_space<vmem>>, vector<512x8xbf16>
    tpu.vector_store %arg7[%c0_16, %c0_17], %34 {strides = array<i32>} : memref<512x8xbf16, #tpu.memory_space<vmem>>, vector<512x8xbf16>,
    %36 = vector.extract_strided_slice %32 {offsets = [0, 8], sizes = [512, 8], strides = [1, 1]} : vector<512x16xf32> to vector<512x8xf32>
    %37 = arith.truncf %36 : vector<512x8xf32> to vector<512x8xbf16>
    %c0_18 = arith.constant 0 : index
    %c0_19 = arith.constant 0 : index
    %38 = vector.load %arg8[%c0_18, %c0_19] : memref<512x8xbf16, #tpu.memory_space<vmem>>, vector<512x8xbf16>
    tpu.vector_store %arg8[%c0_18, %c0_19], %37 {strides = array<i32>} : memref<512x8xbf16, #tpu.memory_space<vmem>>, vector<512x8xbf16>,
    return
  }
  func.func @transform_0(%arg0: i32) -> (i32, i32) {
    %c0_i32 = arith.constant 0 : i32
    %c0_i32_0 = arith.constant 0 : i32
    return %arg0, %c0_i32 : i32, i32
  }
  func.func @transform_1(%arg0: i32) -> (i32, i32) {
    %c0_i32 = arith.constant 0 : i32
    %c0_i32_0 = arith.constant 0 : i32
    return %arg0, %c0_i32 : i32, i32
  }
  func.func @transform_2(%arg0: i32) -> (i32, i32) {
    %c0_i32 = arith.constant 0 : i32
    %c0_i32_0 = arith.constant 0 : i32
    %c0_i32_1 = arith.constant 0 : i32
    return %c0_i32, %c0_i32_0 : i32, i32
  }
  func.func @transform_3(%arg0: i32) -> (i32, i32) {
    %c0_i32 = arith.constant 0 : i32
    %c0_i32_0 = arith.constant 0 : i32
    %c0_i32_1 = arith.constant 0 : i32
    return %c0_i32, %c0_i32_0 : i32, i32
  }
  func.func @transform_4(%arg0: i32) -> (i32, i32) {
    %c0_i32 = arith.constant 0 : i32
    %c0_i32_0 = arith.constant 0 : i32
    %c0_i32_1 = arith.constant 0 : i32
    return %c0_i32, %c0_i32_0 : i32, i32
  }
  func.func @transform_5(%arg0: i32) -> (i32, i32) {
    %c0_i32 = arith.constant 0 : i32
    %c0_i32_0 = arith.constant 0 : i32
    %c0_i32_1 = arith.constant 0 : i32
    return %c0_i32, %c0_i32_0 : i32, i32
  }
  func.func @transform_6(%arg0: i32) -> (i32, i32) {
    %c0_i32 = arith.constant 0 : i32
    %c0_i32_0 = arith.constant 0 : i32
    return %arg0, %c0_i32 : i32, i32
  }
  func.func @transform_7(%arg0: i32) -> (i32, i32) {
    %c0_i32 = arith.constant 0 : i32
    %c0_i32_0 = arith.constant 0 : i32
    return %arg0, %c0_i32 : i32, i32
  }
}

</mosaic_0001>

<llo_original>
// kernel: tpu_custom_call.1
$region0: #{tpu_custom_call.1}
  #allocation0 [shape = 'u32[]', space=smem, size = 0x4, offset = 0x4, fixed_abs, tag = 'smem constant byte address 0x4 - core index']
  #allocation1 [shape = 'u32[144,128]{1,0:T(1,128)}', space=vmem, size = 0x12000, scoped, tag = 'internal scratch']
  %s0 = inlined_call_operand.vmem [shape: f32[2048,32], index: 0, kind: input, shape index: {}]
  %s1 = inlined_call_operand.vmem [shape: f32[2048,1], index: 1, kind: input, shape index: {}]
  %s2 = inlined_call_operand.vmem [shape: f32[1,32], index: 2, kind: input, shape index: {}]
  %s3 = inlined_call_operand.vmem [shape: f32[1,32], index: 3, kind: input, shape index: {}]
  %s4 = inlined_call_operand.vmem [shape: f32[32,16], index: 4, kind: input, shape index: {}]
  %s5 = inlined_call_operand.vmem [shape: f32[1,16], index: 5, kind: input, shape index: {}]
  %s6 = inlined_call_operand.vmem [shape: bf16[2048,8], index: 6, kind: output, shape index: {0}]
  %s7 = inlined_call_operand.vmem [shape: bf16[2048,8], index: 7, kind: output, shape index: {1}]
  %8 = xla_tuple %s6, %s7
  %s9 = sld [smem:[#allocation0]]
  $region65: #{tpu_custom_call.1} parent=0
    _
  %s11 = ssub.s32 1, %s9
  %s12 = scalar_select 0, %s11, %s9
  loop: start=0, step=1, limit=6
  $region2: #{tpu_custom_call.1} parent=0 // loop_pre_header
    _
  $region3: #{tpu_custom_call.1} parent=0 // loop_header
    %s14 = sphi 0, %s18
    %p15 = scmp.ge.s32.totalorder %s14, 6
    %s24 = sphi 0, %s26
    %s27 = sphi 0, %s24
    %s28 = sphi 0, %s27
    %s44 = sphi 0, %s28
    %s50 = sphi 0, %s52
    %s53 = sphi 0, %s50
    %s54 = sphi 0, %s53
    %s70 = sphi 0, %s54
    %s74 = sphi 0, %s74
    %s76 = sphi 0, %s74
    %s77 = sphi 0, %s76
    %s91 = sphi 0, %s77
    %s95 = sphi 0, %s95
    %s97 = sphi 0, %s95
    %s98 = sphi 0, %s97
    %s112 = sphi 0, %s98
    %s116 = sphi 0, %s116
    %s118 = sphi 0, %s116
    %s119 = sphi 0, %s118
    %s133 = sphi 0, %s119
    %s137 = sphi 0, %s137
    %s139 = sphi 0, %s137
    %s140 = sphi 0, %s139
    %s154 = sphi 0, %s140
    %s160 = sphi 0, %s162
    %s163 = sphi 0, %s160
    %s164 = sphi 0, %s163
    %s180 = sphi 0, %s164
    %s186 = sphi 0, %s188
    %s189 = sphi 0, %s186
    %s190 = sphi 0, %s189
    %s206 = sphi 0, %s190
  $region4: #{tpu_custom_call.1} parent=0 // loop_header_branch
    %17 = sbr.rel (%p15) target = $region8
  $region5: #{tpu_custom_call.1} parent=0 // loop_body
    %s19 = ssub.s32 %s14, 1
    %s20 = ssub.s32 %s14, 2
    %s21 = sadd.s32 %s14, 1
    %s22 = ssub.s32 %s14, %s21
    %p23 = scmp.eq.s32.totalorder %s22, 0
    %s25 = sadd.s32 %s24, 1
    %s26 = scalar_select %p23, %s24, %s25
    %p29 = pneg %p23
    %p30 = scmp.eq.s32.totalorder %s14, 3
    %p31 = por %p29, %p30
    %p32 = scmp.ne.s32.totalorder %s24, %s27
    %p33 = scmp.eq.s32.totalorder %s14, 0
    %p34 = por %p32, %p33
    %p35 = scmp.ne.s32.totalorder %s24, %s27
    %p36 = scmp.eq.s32.totalorder %s19, 3
    %p37 = por %p35, %p36
    %p38 = scmp.ne.s32.totalorder %s27, %s28
    %p39 = scmp.eq.s32.totalorder %s19, 0
    %p40 = por %p38, %p39
    %p41 = scmp.ne.s32.totalorder %s27, %s28
    %p42 = scmp.eq.s32.totalorder %s20, 3
    %p43 = por %p41, %p42
    %p45 = scmp.ne.s32.totalorder %s28, %s44
    %p46 = scmp.eq.s32.totalorder %s20, 0
    %p47 = por %p45, %p46
    %s48 = ssub.s32 %s14, %s21
    %p49 = scmp.eq.s32.totalorder %s48, 0
    %s51 = sadd.s32 %s50, 1
    %s52 = scalar_select %p49, %s50, %s51
    %p55 = pneg %p49
    %p56 = scmp.eq.s32.totalorder %s14, 3
    %p57 = por %p55, %p56
    %p58 = scmp.ne.s32.totalorder %s50, %s53
    %p59 = scmp.eq.s32.totalorder %s14, 0
    %p60 = por %p58, %p59
    %p61 = scmp.ne.s32.totalorder %s50, %s53
    %p62 = scmp.eq.s32.totalorder %s19, 3
    %p63 = por %p61, %p62
    %p64 = scmp.ne.s32.totalorder %s53, %s54
    %p65 = scmp.eq.s32.totalorder %s19, 0
    %p66 = por %p64, %p65
    %p67 = scmp.ne.s32.totalorder %s53, %s54
    %p68 = scmp.eq.s32.totalorder %s20, 3
    %p69 = por %p67, %p68
    %p71 = scmp.ne.s32.totalorder %s54, %s70
    %p72 = scmp.eq.s32.totalorder %s20, 0
    %p73 = por %p71, %p72
    %s75 = sadd.s32 %s74, 1
    %p78 = scmp.eq.s32.totalorder %s14, 3
    %p79 = scmp.ne.s32.totalorder %s74, %s76
    %p80 = scmp.eq.s32.totalorder %s14, 0
    %p81 = por %p79, %p80
    %p82 = scmp.ne.s32.totalorder %s74, %s76
    %p83 = scmp.eq.s32.totalorder %s19, 3
    %p84 = por %p82, %p83
    %p85 = scmp.ne.s32.totalorder %s76, %s77
    %p86 = scmp.eq.s32.totalorder %s19, 0
    %p87 = por %p85, %p86
    %p88 = scmp.ne.s32.totalorder %s76, %s77
    %p89 = scmp.eq.s32.totalorder %s20, 3
    %p90 = por %p88, %p89
    %p92 = scmp.ne.s32.totalorder %s77, %s91
    %p93 = scmp.eq.s32.totalorder %s20, 0
    %p94 = por %p92, %p93
    %s96 = sadd.s32 %s95, 1
    %p99 = scmp.eq.s32.totalorder %s14, 3
    %p100 = scmp.ne.s32.totalorder %s95, %s97
    %p101 = scmp.eq.s32.totalorder %s14, 0
    %p102 = por %p100, %p101
    %p103 = scmp.ne.s32.totalorder %s95, %s97
    %p104 = scmp.eq.s32.totalorder %s19, 3
    %p105 = por %p103, %p104
    %p106 = scmp.ne.s32.totalorder %s97, %s98
    %p107 = scmp.eq.s32.totalorder %s19, 0
    %p108 = por %p106, %p107
    %p109 = scmp.ne.s32.totalorder %s97, %s98
    %p110 = scmp.eq.s32.totalorder %s20, 3
    %p111 = por %p109, %p110
    %p113 = scmp.ne.s32.totalorder %s98, %s112
    %p114 = scmp.eq.s32.totalorder %s20, 0
    %p115 = por %p113, %p114
    %s117 = sadd.s32 %s116, 1
    %p120 = scmp.eq.s32.totalorder %s14, 3
    %p121 = scmp.ne.s32.totalorder %s116, %s118
    %p122 = scmp.eq.s32.totalorder %s14, 0
    %p123 = por %p121, %p122
    %p124 = scmp.ne.s32.totalorder %s116, %s118
    %p125 = scmp.eq.s32.totalorder %s19, 3
    %p126 = por %p124, %p125
    %p127 = scmp.ne.s32.totalorder %s118, %s119
    %p128 = scmp.eq.s32.totalorder %s19, 0
    %p129 = por %p127, %p128
    %p130 = scmp.ne.s32.totalorder %s118, %s119
    %p131 = scmp.eq.s32.totalorder %s20, 3
    %p132 = por %p130, %p131
    %p134 = scmp.ne.s32.totalorder %s119, %s133
    %p135 = scmp.eq.s32.totalorder %s20, 0
    %p136 = por %p134, %p135
    %s138 = sadd.s32 %s137, 1
    %p141 = scmp.eq.s32.totalorder %s14, 3
    %p142 = scmp.ne.s32.totalorder %s137, %s139
    %p143 = scmp.eq.s32.totalorder %s14, 0
    %p144 = por %p142, %p143
    %p145 = scmp.ne.s32.totalorder %s137, %s139
    %p146 = scmp.eq.s32.totalorder %s19, 3
    %p147 = por %p145, %p146
    %p148 = scmp.ne.s32.totalorder %s139, %s140
    %p149 = scmp.eq.s32.totalorder %s19, 0
    %p150 = por %p148, %p149
    %p151 = scmp.ne.s32.totalorder %s139, %s140
    %p152 = scmp.eq.s32.totalorder %s20, 3
    %p153 = por %p151, %p152
    %p155 = scmp.ne.s32.totalorder %s140, %s154
    %p156 = scmp.eq.s32.totalorder %s20, 0
    %p157 = por %p155, %p156
    %s158 = ssub.s32 %s14, %s21
    %p159 = scmp.eq.s32.totalorder %s158, 0
    %s161 = sadd.s32 %s160, 1
    %s162 = scalar_select %p159, %s160, %s161
    %p165 = pneg %p159
    %p166 = scmp.eq.s32.totalorder %s14, 3
    %p167 = por %p165, %p166
    %p168 = scmp.ne.s32.totalorder %s160, %s163
    %p169 = scmp.eq.s32.totalorder %s14, 0
    %p170 = por %p168, %p169
    %p171 = scmp.ne.s32.totalorder %s160, %s163
    %p172 = scmp.eq.s32.totalorder %s19, 3
    %p173 = por %p171, %p172
    %p174 = scmp.ne.s32.totalorder %s163, %s164
    %p175 = scmp.eq.s32.totalorder %s19, 0
    %p176 = por %p174, %p175
    %p177 = scmp.ne.s32.totalorder %s163, %s164
    %p178 = scmp.eq.s32.totalorder %s20, 3
    %p179 = por %p177, %p178
    %p181 = scmp.ne.s32.totalorder %s164, %s180
    %p182 = scmp.eq.s32.totalorder %s20, 0
    %p183 = por %p181, %p182
    %s184 = ssub.s32 %s14, %s21
    %p185 = scmp.eq.s32.totalorder %s184, 0
    %s187 = sadd.s32 %s186, 1
    %s188 = scalar_select %p185, %s186, %s187
    %p191 = pneg %p185
    %p192 = scmp.eq.s32.totalorder %s14, 3
    %p193 = por %p191, %p192
    %p194 = scmp.ne.s32.totalorder %s186, %s189
    %p195 = scmp.eq.s32.totalorder %s14, 0
    %p196 = por %p194, %p195
    %p197 = scmp.ne.s32.totalorder %s186, %s189
    %p198 = scmp.eq.s32.totalorder %s19, 3
    %p199 = por %p197, %p198
    %p200 = scmp.ne.s32.totalorder %s189, %s190
    %p201 = scmp.eq.s32.totalorder %s19, 0
    %p202 = por %p200, %p201
    %p203 = scmp.ne.s32.totalorder %s189, %s190
    %p204 = scmp.eq.s32.totalorder %s20, 3
    %p205 = por %p203, %p204
    %p207 = scmp.ne.s32.totalorder %s190, %s206
    %p208 = scmp.eq.s32.totalorder %s20, 0
    %p209 = por %p207, %p208
    %p210 = scmp.le.s32.totalorder 1, %s14
    %p211 = scmp.lt.s32.totalorder %s14, 5
    %p212 = pnand %p210, %p211
    %p213 = pneg %p212
    // Predicated region
    $region9: #{tpu_custom_call.1} parent=5 // pred_check
      _
    $region10: #{tpu_custom_call.1} parent=5 // pred_check_branch
      %215 = sbr.rel (%p212) target = $region12
    $region11: #{tpu_custom_call.1} parent=5 // pred_region
      %s216 = ssub.s32 %s14, 1
      // Predicated region
      $region13: #{tpu_custom_call.1} parent=11 // pred_check
        %p217 = pneg %p87
      $region14: #{tpu_custom_call.1} parent=11 // pred_check_branch
        %219 = sbr.rel (%p217) target = $region16
      $region15: #{tpu_custom_call.1} parent=11 // pred_region
        _
      $region16: #{tpu_custom_call.1} parent=11 // pred_fallthru
        _
      // Predicated region
      $region17: #{tpu_custom_call.1} parent=11 // pred_check
        %p220 = pneg %p108
      $region18: #{tpu_custom_call.1} parent=11 // pred_check_branch
        %222 = sbr.rel (%p220) target = $region20
      $region19: #{tpu_custom_call.1} parent=11 // pred_region
        _
      $region20: #{tpu_custom_call.1} parent=11 // pred_fallthru
        _
      // Predicated region
      $region21: #{tpu_custom_call.1} parent=11 // pred_check
        %p223 = pneg %p129
      $region22: #{tpu_custom_call.1} parent=11 // pred_check_branch
        %225 = sbr.rel (%p223) target = $region24
      $region23: #{tpu_custom_call.1} parent=11 // pred_region
        _
      $region24: #{tpu_custom_call.1} parent=11 // pred_fallthru
        _
      // Predicated region
      $region25: #{tpu_custom_call.1} parent=11 // pred_check
        %p226 = pneg %p150
      $region26: #{tpu_custom_call.1} parent=11 // pred_check_branch
        %228 = sbr.rel (%p226) target = $region28
      $region27: #{tpu_custom_call.1} parent=11 // pred_region
        _
      $region28: #{tpu_custom_call.1} parent=11 // pred_fallthru
        _
    $region12: #{tpu_custom_call.1} parent=5 // pred_fallthru
      _
    %p229 = scmp.lt.s32.totalorder %s14, 4
    // Predicated region
    $region29: #{tpu_custom_call.1} parent=5 // pred_check
      %p230 = pneg %p229
    $region30: #{tpu_custom_call.1} parent=5 // pred_check_branch
      %232 = sbr.rel (%p230) target = $region32
    $region31: #{tpu_custom_call.1} parent=5 // pred_region
      // Predicated region
      $region33: #{tpu_custom_call.1} parent=31 // pred_check
        %p233 = pneg %p34
      $region34: #{tpu_custom_call.1} parent=31 // pred_check_branch
        %235 = sbr.rel (%p233) target = $region36
      $region35: #{tpu_custom_call.1} parent=31 // pred_region
        %s236 = smul.u32 64, %s14
        %p237 = scmp.lt.s32.totalorder %s236, 255
        %s238 = scalar_select %p237, %s236, 255
        %s239 = smul.addr %s238, 8
        %s240 = scalar_lea.vmem %s0, %s239
        %s241 = smul.u32 64, %s14
      $region36: #{tpu_custom_call.1} parent=31 // pred_fallthru
        _
      // Predicated region
      $region37: #{tpu_custom_call.1} parent=31 // pred_check
        %p242 = pneg %p60
      $region38: #{tpu_custom_call.1} parent=31 // pred_check_branch
        %244 = sbr.rel (%p242) target = $region40
      $region39: #{tpu_custom_call.1} parent=31 // pred_region
        %s245 = smul.u32 64, %s14
        %p246 = scmp.lt.s32.totalorder %s245, 255
        %s247 = scalar_select %p246, %s245, 255
        %s248 = smul.addr %s247, 8
        %s249 = scalar_lea.vmem %s1, %s248
        %s250 = smul.u32 64, %s14
      $region40: #{tpu_custom_call.1} parent=31 // pred_fallthru
        _
    $region32: #{tpu_custom_call.1} parent=5 // pred_fallthru
      _
    %p251 = scmp.le.s32.totalorder 1, %s14
    %p252 = scmp.lt.s32.totalorder %s14, 5
    %p253 = pnand %p251, %p252
    %p254 = pneg %p253
    // Predicated region
    $region41: #{tpu_custom_call.1} parent=5 // pred_check
      _
    $region42: #{tpu_custom_call.1} parent=5 // pred_check_branch
      %256 = sbr.rel (%p253) target = $region44
    $region43: #{tpu_custom_call.1} parent=5 // pred_region
      %s257 = ssub.s32 %s14, 1
      %s258 = smul.u32 64, %s19
      %p259 = scmp.lt.s32.totalorder %s258, 255
      %s260 = scalar_select %p259, %s258, 255
      %s261 = smul.addr %s260, 8
      %s262 = scalar_lea.vmem %s0, %s261
      %p263 = pneg %p40
      %p264 = pneg %p37
      %s265 = smul.u32 64, %s19
      %p266 = scmp.lt.s32.totalorder %s265, 255
      %s267 = scalar_select %p266, %s265, 255
      %s268 = smul.addr %s267, 8
      %s269 = scalar_lea.vmem %s1, %s268
      %p270 = pneg %p66
      %p271 = pneg %p63
      %p272 = pneg %p87
      %p273 = pneg %p84
      %p274 = pneg %p108
      %p275 = pneg %p105
      %p276 = pneg %p129
      %p277 = pneg %p126
      %p278 = pneg %p150
      %p279 = pneg %p147
      %p280 = pneg %p176
      %p281 = pneg %p173
      %s282 = smul.u32 64, %s19
      %p283 = scmp.lt.s32.totalorder %s282, 255
      %s284 = scalar_select %p283, %s282, 255
      %s285 = smul.addr %s284, 4
      %s286 = scalar_lea.vmem %s6, %s285
      %p287 = pneg %p202
      %p288 = pneg %p199
      %s289 = smul.u32 64, %s19
      %p290 = scmp.lt.s32.totalorder %s289, 255
      %s291 = scalar_select %p290, %s289, 255
      %s292 = smul.addr %s291, 4
      %s293 = scalar_lea.vmem %s7, %s292
      %s294 = smul.u32 64, %s19
      %p295 = scmp.lt.s32.totalorder %s294, 255
      %s296 = scalar_select %p295, %s294, 255
      %s297 = smul.addr %s296, 8
      %s298 = scalar_lea.vmem %s0, %s297
      %s299 = smul.u32 64, %s19
      %s300 = smul.u32 64, %s19
      %p301 = scmp.lt.s32.totalorder %s300, 255
      %s302 = scalar_select %p301, %s300, 255
      %s303 = smul.addr %s302, 8
      %s304 = scalar_lea.vmem %s1, %s303
      %s305 = smul.u32 64, %s19
      %s306 = smul.u32 64, %s19
      %p307 = scmp.lt.s32.totalorder %s306, 255
      %s308 = scalar_select %p307, %s306, 255
      %s309 = smul.addr %s308, 4
      %s310 = scalar_lea.vmem %s6, %s309
      %s311 = smul.u32 64, %s19
      %s312 = smul.u32 64, %s19
      %p313 = scmp.lt.s32.totalorder %s312, 255
      %s314 = scalar_select %p313, %s312, 255
      %s315 = smul.addr %s314, 4
      %s316 = scalar_lea.vmem %s7, %s315
      %s317 = smul.u32 64, %s19
      %v318 = vld [vmem:[%s298] sm:$0xff]
      %v319 = vld [vmem:[%s298 + $0x8] sm:$0xff]
      %v320 = vld [vmem:[%s298 + $0x10] sm:$0xff]
      %v321 = vld [vmem:[%s298 + $0x18] sm:$0xff]
      %v322 = vld [vmem:[%s298 + $0x20] sm:$0xff]
      %v323 = vld [vmem:[%s298 + $0x28] sm:$0xff]
      %v324 = vld [vmem:[%s298 + $0x30] sm:$0xff]
      %v325 = vld [vmem:[%s298 + $0x38] sm:$0xff]
      %v326 = vld [vmem:[%s298 + $0x40] sm:$0xff]
      %v327 = vld [vmem:[%s298 + $0x48] sm:$0xff]
      %v328 = vld [vmem:[%s298 + $0x50] sm:$0xff]
      %v329 = vld [vmem:[%s298 + $0x58] sm:$0xff]
      %v330 = vld [vmem:[%s298 + $0x60] sm:$0xff]
      %v331 = vld [vmem:[%s298 + $0x68] sm:$0xff]
      %v332 = vld [vmem:[%s298 + $0x70] sm:$0xff]
      %v333 = vld [vmem:[%s298 + $0x78] sm:$0xff]
      %v334 = vld [vmem:[%s298 + $0x80] sm:$0xff]
      %v335 = vld [vmem:[%s298 + $0x88] sm:$0xff]
      %v336 = vld [vmem:[%s298 + $0x90] sm:$0xff]
      %v337 = vld [vmem:[%s298 + $0x98] sm:$0xff]
      %v338 = vld [vmem:[%s298 + $0xa0] sm:$0xff]
      %v339 = vld [vmem:[%s298 + $0xa8] sm:$0xff]
      %v340 = vld [vmem:[%s298 + $0xb0] sm:$0xff]
      %v341 = vld [vmem:[%s298 + $0xb8] sm:$0xff]
      %v342 = vld [vmem:[%s298 + $0xc0] sm:$0xff]
      %v343 = vld [vmem:[%s298 + $0xc8] sm:$0xff]
      %v344 = vld [vmem:[%s298 + $0xd0] sm:$0xff]
      %v345 = vld [vmem:[%s298 + $0xd8] sm:$0xff]
      %v346 = vld [vmem:[%s298 + $0xe0] sm:$0xff]
      %v347 = vld [vmem:[%s298 + $0xe8] sm:$0xff]
      %v348 = vld [vmem:[%s298 + $0xf0] sm:$0xff]
      %v349 = vld [vmem:[%s298 + $0xf8] sm:$0xff]
      %v350 = vld [vmem:[%s298 + $0x100] sm:$0xff]
      %v351 = vld [vmem:[%s298 + $0x108] sm:$0xff]
      %v352 = vld [vmem:[%s298 + $0x110] sm:$0xff]
      %v353 = vld [vmem:[%s298 + $0x118] sm:$0xff]
      %v354 = vld [vmem:[%s298 + $0x120] sm:$0xff]
      %v355 = vld [vmem:[%s298 + $0x128] sm:$0xff]
      %v356 = vld [vmem:[%s298 + $0x130] sm:$0xff]
      %v357 = vld [vmem:[%s298 + $0x138] sm:$0xff]
      %v358 = vld [vmem:[%s298 + $0x140] sm:$0xff]
      %v359 = vld [vmem:[%s298 + $0x148] sm:$0xff]
      %v360 = vld [vmem:[%s298 + $0x150] sm:$0xff]
      %v361 = vld [vmem:[%s298 + $0x158] sm:$0xff]
      %v362 = vld [vmem:[%s298 + $0x160] sm:$0xff]
      %v363 = vld [vmem:[%s298 + $0x168] sm:$0xff]
      %v364 = vld [vmem:[%s298 + $0x170] sm:$0xff]
      %v365 = vld [vmem:[%s298 + $0x178] sm:$0xff]
      %v366 = vld [vmem:[%s298 + $0x180] sm:$0xff]
      %v367 = vld [vmem:[%s298 + $0x188] sm:$0xff]
      %v368 = vld [vmem:[%s298 + $0x190] sm:$0xff]
      %v369 = vld [vmem:[%s298 + $0x198] sm:$0xff]
      %v370 = vld [vmem:[%s298 + $0x1a0] sm:$0xff]
      %v371 = vld [vmem:[%s298 + $0x1a8] sm:$0xff]
      %v372 = vld [vmem:[%s298 + $0x1b0] sm:$0xff]
      %v373 = vld [vmem:[%s298 + $0x1b8] sm:$0xff]
      %v374 = vld [vmem:[%s298 + $0x1c0] sm:$0xff]
      %v375 = vld [vmem:[%s298 + $0x1c8] sm:$0xff]
      %v376 = vld [vmem:[%s298 + $0x1d0] sm:$0xff]
      %v377 = vld [vmem:[%s298 + $0x1d8] sm:$0xff]
      %v378 = vld [vmem:[%s298 + $0x1e0] sm:$0xff]
      %v379 = vld [vmem:[%s298 + $0x1e8] sm:$0xff]
      %v380 = vld [vmem:[%s298 + $0x1f0] sm:$0xff]
      %v381 = vld [vmem:[%s298 + $0x1f8] sm:$0xff]
      %vm382 = vcmask 261120
      %v383 = vsel %vm382, %v318, 0.0
      %384 = vadd.xlane.f32.xlu0 %v383
      %v385 = vpop.xlane.xlu0 %384
      %v386 = vsel %vm382, %v319, 0.0
      %387 = vadd.xlane.f32.xlu0 %v386
      %v388 = vpop.xlane.xlu0 %387
      %v389 = vsel %vm382, %v320, 0.0
      %390 = vadd.xlane.f32.xlu0 %v389
      %v391 = vpop.xlane.xlu0 %390
      %v392 = vsel %vm382, %v321, 0.0
      %393 = vadd.xlane.f32.xlu0 %v392
      %v394 = vpop.xlane.xlu0 %393
      %v395 = vsel %vm382, %v322, 0.0
      %396 = vadd.xlane.f32.xlu0 %v395
      %v397 = vpop.xlane.xlu0 %396
      %v398 = vsel %vm382, %v323, 0.0
      %399 = vadd.xlane.f32.xlu0 %v398
      %v400 = vpop.xlane.xlu0 %399
      %v401 = vsel %vm382, %v324, 0.0
      %402 = vadd.xlane.f32.xlu0 %v401
      %v403 = vpop.xlane.xlu0 %402
      %v404 = vsel %vm382, %v325, 0.0
      %405 = vadd.xlane.f32.xlu0 %v404
      %v406 = vpop.xlane.xlu0 %405
      %v407 = vsel %vm382, %v326, 0.0
      %408 = vadd.xlane.f32.xlu0 %v407
      %v409 = vpop.xlane.xlu0 %408
      %v410 = vsel %vm382, %v327, 0.0
      %411 = vadd.xlane.f32.xlu0 %v410
      %v412 = vpop.xlane.xlu0 %411
      %v413 = vsel %vm382, %v328, 0.0
      %414 = vadd.xlane.f32.xlu0 %v413
      %v415 = vpop.xlane.xlu0 %414
      %v416 = vsel %vm382, %v329, 0.0
      %417 = vadd.xlane.f32.xlu0 %v416
      %v418 = vpop.xlane.xlu0 %417
      %v419 = vsel %vm382, %v330, 0.0
      %420 = vadd.xlane.f32.xlu0 %v419
      %v421 = vpop.xlane.xlu0 %420
      %v422 = vsel %vm382, %v331, 0.0
      %423 = vadd.xlane.f32.xlu0 %v422
      %v424 = vpop.xlane.xlu0 %423
      %v425 = vsel %vm382, %v332, 0.0
      %426 = vadd.xlane.f32.xlu0 %v425
      %v427 = vpop.xlane.xlu0 %426
      %v428 = vsel %vm382, %v333, 0.0
      %429 = vadd.xlane.f32.xlu0 %v428
      %v430 = vpop.xlane.xlu0 %429
      %v431 = vsel %vm382, %v334, 0.0
      %432 = vadd.xlane.f32.xlu0 %v431
      %v433 = vpop.xlane.xlu0 %432
      %v434 = vsel %vm382, %v335, 0.0
      %435 = vadd.xlane.f32.xlu0 %v434
      %v436 = vpop.xlane.xlu0 %435
      %v437 = vsel %vm382, %v336, 0.0
      %438 = vadd.xlane.f32.xlu0 %v437
      %v439 = vpop.xlane.xlu0 %438
      %v440 = vsel %vm382, %v337, 0.0
      %441 = vadd.xlane.f32.xlu0 %v440
      %v442 = vpop.xlane.xlu0 %441
      %v443 = vsel %vm382, %v338, 0.0
      %444 = vadd.xlane.f32.xlu0 %v443
      %v445 = vpop.xlane.xlu0 %444
      %v446 = vsel %vm382, %v339, 0.0
      %447 = vadd.xlane.f32.xlu0 %v446
      %v448 = vpop.xlane.xlu0 %447
      %v449 = vsel %vm382, %v340, 0.0
      %450 = vadd.xlane.f32.xlu0 %v449
      %v451 = vpop.xlane.xlu0 %450
      %v452 = vsel %vm382, %v341, 0.0
      %453 = vadd.xlane.f32.xlu0 %v452
      %v454 = vpop.xlane.xlu0 %453
      %v455 = vsel %vm382, %v342, 0.0
      %456 = vadd.xlane.f32.xlu0 %v455
      %v457 = vpop.xlane.xlu0 %456
      %v458 = vsel %vm382, %v343, 0.0
      %459 = vadd.xlane.f32.xlu0 %v458
      %v460 = vpop.xlane.xlu0 %459
      %v461 = vsel %vm382, %v344, 0.0
      %462 = vadd.xlane.f32.xlu0 %v461
      %v463 = vpop.xlane.xlu0 %462
      %v464 = vsel %vm382, %v345, 0.0
      %465 = vadd.xlane.f32.xlu0 %v464
      %v466 = vpop.xlane.xlu0 %465
      %v467 = vsel %vm382, %v346, 0.0
      %468 = vadd.xlane.f32.xlu0 %v467
      %v469 = vpop.xlane.xlu0 %468
      %v470 = vsel %vm382, %v347, 0.0
      %471 = vadd.xlane.f32.xlu0 %v470
      %v472 = vpop.xlane.xlu0 %471
      %v473 = vsel %vm382, %v348, 0.0
      %474 = vadd.xlane.f32.xlu0 %v473
      %v475 = vpop.xlane.xlu0 %474
      %v476 = vsel %vm382, %v349, 0.0
      %477 = vadd.xlane.f32.xlu0 %v476
      %v478 = vpop.xlane.xlu0 %477
      %v479 = vsel %vm382, %v350, 0.0
      %480 = vadd.xlane.f32.xlu0 %v479
      %v481 = vpop.xlane.xlu0 %480
      %v482 = vsel %vm382, %v351, 0.0
      %483 = vadd.xlane.f32.xlu0 %v482
      %v484 = vpop.xlane.xlu0 %483
      %v485 = vsel %vm382, %v352, 0.0
      %486 = vadd.xlane.f32.xlu0 %v485
      %v487 = vpop.xlane.xlu0 %486
      %v488 = vsel %vm382, %v353, 0.0
      %489 = vadd.xlane.f32.xlu0 %v488
      %v490 = vpop.xlane.xlu0 %489
      %v491 = vsel %vm382, %v354, 0.0
      %492 = vadd.xlane.f32.xlu0 %v491
      %v493 = vpop.xlane.xlu0 %492
      %v494 = vsel %vm382, %v355, 0.0
      %495 = vadd.xlane.f32.xlu0 %v494
      %v496 = vpop.xlane.xlu0 %495
      %v497 = vsel %vm382, %v356, 0.0
      %498 = vadd.xlane.f32.xlu0 %v497
      %v499 = vpop.xlane.xlu0 %498
      %v500 = vsel %vm382, %v357, 0.0
      %501 = vadd.xlane.f32.xlu0 %v500
      %v502 = vpop.xlane.xlu0 %501
      %v503 = vsel %vm382, %v358, 0.0
      %504 = vadd.xlane.f32.xlu0 %v503
      %v505 = vpop.xlane.xlu0 %504
      %v506 = vsel %vm382, %v359, 0.0
      %507 = vadd.xlane.f32.xlu0 %v506
      %v508 = vpop.xlane.xlu0 %507
      %v509 = vsel %vm382, %v360, 0.0
      %510 = vadd.xlane.f32.xlu0 %v509
      %v511 = vpop.xlane.xlu0 %510
      %v512 = vsel %vm382, %v361, 0.0
      %513 = vadd.xlane.f32.xlu0 %v512
      %v514 = vpop.xlane.xlu0 %513
      %v515 = vsel %vm382, %v362, 0.0
      %516 = vadd.xlane.f32.xlu0 %v515
      %v517 = vpop.xlane.xlu0 %516
      %v518 = vsel %vm382, %v363, 0.0
      %519 = vadd.xlane.f32.xlu0 %v518
      %v520 = vpop.xlane.xlu0 %519
      %v521 = vsel %vm382, %v364, 0.0
      %522 = vadd.xlane.f32.xlu0 %v521
      %v523 = vpop.xlane.xlu0 %522
      %v524 = vsel %vm382, %v365, 0.0
      %525 = vadd.xlane.f32.xlu0 %v524
      %v526 = vpop.xlane.xlu0 %525
      %v527 = vsel %vm382, %v366, 0.0
      %528 = vadd.xlane.f32.xlu0 %v527
      %v529 = vpop.xlane.xlu0 %528
      %v530 = vsel %vm382, %v367, 0.0
      %531 = vadd.xlane.f32.xlu0 %v530
      %v532 = vpop.xlane.xlu0 %531
      %v533 = vsel %vm382, %v368, 0.0
      %534 = vadd.xlane.f32.xlu0 %v533
      %v535 = vpop.xlane.xlu0 %534
      %v536 = vsel %vm382, %v369, 0.0
      %537 = vadd.xlane.f32.xlu0 %v536
      %v538 = vpop.xlane.xlu0 %537
      %v539 = vsel %vm382, %v370, 0.0
      %540 = vadd.xlane.f32.xlu0 %v539
      %v541 = vpop.xlane.xlu0 %540
      %v542 = vsel %vm382, %v371, 0.0
      %543 = vadd.xlane.f32.xlu0 %v542
      %v544 = vpop.xlane.xlu0 %543
      %v545 = vsel %vm382, %v372, 0.0
      %546 = vadd.xlane.f32.xlu0 %v545
      %v547 = vpop.xlane.xlu0 %546
      %v548 = vsel %vm382, %v373, 0.0
      %549 = vadd.xlane.f32.xlu0 %v548
      %v550 = vpop.xlane.xlu0 %549
      %v551 = vsel %vm382, %v374, 0.0
      %552 = vadd.xlane.f32.xlu0 %v551
      %v553 = vpop.xlane.xlu0 %552
      %v554 = vsel %vm382, %v375, 0.0
      %555 = vadd.xlane.f32.xlu0 %v554
      %v556 = vpop.xlane.xlu0 %555
      %v557 = vsel %vm382, %v376, 0.0
      %558 = vadd.xlane.f32.xlu0 %v557
      %v559 = vpop.xlane.xlu0 %558
      %v560 = vsel %vm382, %v377, 0.0
      %561 = vadd.xlane.f32.xlu0 %v560
      %v562 = vpop.xlane.xlu0 %561
      %v563 = vsel %vm382, %v378, 0.0
      %564 = vadd.xlane.f32.xlu0 %v563
      %v565 = vpop.xlane.xlu0 %564
      %v566 = vsel %vm382, %v379, 0.0
      %567 = vadd.xlane.f32.xlu0 %v566
      %v568 = vpop.xlane.xlu0 %567
      %v569 = vsel %vm382, %v380, 0.0
      %570 = vadd.xlane.f32.xlu0 %v569
      %v571 = vpop.xlane.xlu0 %570
      %v572 = vsel %vm382, %v381, 0.0
      %573 = vadd.xlane.f32.xlu0 %v572
      %v574 = vpop.xlane.xlu0 %573
      %v575 = vrcp.pop 32.0
      %v576 = vmul.f32 %v385, %v575
      %v577 = vmul.f32 %v388, %v575
      %v578 = vmul.f32 %v391, %v575
      %v579 = vmul.f32 %v394, %v575
      %v580 = vmul.f32 %v397, %v575
      %v581 = vmul.f32 %v400, %v575
      %v582 = vmul.f32 %v403, %v575
      %v583 = vmul.f32 %v406, %v575
      %v584 = vmul.f32 %v409, %v575
      %v585 = vmul.f32 %v412, %v575
      %v586 = vmul.f32 %v415, %v575
      %v587 = vmul.f32 %v418, %v575
      %v588 = vmul.f32 %v421, %v575
      %v589 = vmul.f32 %v424, %v575
      %v590 = vmul.f32 %v427, %v575
      %v591 = vmul.f32 %v430, %v575
      %v592 = vmul.f32 %v433, %v575
      %v593 = vmul.f32 %v436, %v575
      %v594 = vmul.f32 %v439, %v575
      %v595 = vmul.f32 %v442, %v575
      %v596 = vmul.f32 %v445, %v575
      %v597 = vmul.f32 %v448, %v575
      %v598 = vmul.f32 %v451, %v575
      %v599 = vmul.f32 %v454, %v575
      %v600 = vmul.f32 %v457, %v575
      %v601 = vmul.f32 %v460, %v575
      %v602 = vmul.f32 %v463, %v575
      %v603 = vmul.f32 %v466, %v575
      %v604 = vmul.f32 %v469, %v575
      %v605 = vmul.f32 %v472, %v575
      %v606 = vmul.f32 %v475, %v575
      %v607 = vmul.f32 %v478, %v575
      %v608 = vmul.f32 %v481, %v575
      %v609 = vmul.f32 %v484, %v575
      %v610 = vmul.f32 %v487, %v575
      %v611 = vmul.f32 %v490, %v575
      %v612 = vmul.f32 %v493, %v575
      %v613 = vmul.f32 %v496, %v575
      %v614 = vmul.f32 %v499, %v575
      %v615 = vmul.f32 %v502, %v575
      %v616 = vmul.f32 %v505, %v575
      %v617 = vmul.f32 %v508, %v575
      %v618 = vmul.f32 %v511, %v575
      %v619 = vmul.f32 %v514, %v575
      %v620 = vmul.f32 %v517, %v575
      %v621 = vmul.f32 %v520, %v575
      %v622 = vmul.f32 %v523, %v575
      %v623 = vmul.f32 %v526, %v575
      %v624 = vmul.f32 %v529, %v575
      %v625 = vmul.f32 %v532, %v575
      %v626 = vmul.f32 %v535, %v575
      %v627 = vmul.f32 %v538, %v575
      %v628 = vmul.f32 %v541, %v575
      %v629 = vmul.f32 %v544, %v575
      %v630 = vmul.f32 %v547, %v575
      %v631 = vmul.f32 %v550, %v575
      %v632 = vmul.f32 %v553, %v575
      %v633 = vmul.f32 %v556, %v575
      %v634 = vmul.f32 %v559, %v575
      %v635 = vmul.f32 %v562, %v575
      %v636 = vmul.f32 %v565, %v575
      %v637 = vmul.f32 %v568, %v575
      %v638 = vmul.f32 %v571, %v575
      %v639 = vmul.f32 %v574, %v575
      %v640 = vsub.f32 %v318, %v576
      %v641 = vsub.f32 %v319, %v577
      %v642 = vsub.f32 %v320, %v578
      %v643 = vsub.f32 %v321, %v579
      %v644 = vsub.f32 %v322, %v580
      %v645 = vsub.f32 %v323, %v581
      %v646 = vsub.f32 %v324, %v582
      %v647 = vsub.f32 %v325, %v583
      %v648 = vsub.f32 %v326, %v584
      %v649 = vsub.f32 %v327, %v585
      %v650 = vsub.f32 %v328, %v586
      %v651 = vsub.f32 %v329, %v587
      %v652 = vsub.f32 %v330, %v588
      %v653 = vsub.f32 %v331, %v589
      %v654 = vsub.f32 %v332, %v590
      %v655 = vsub.f32 %v333, %v591
      %v656 = vsub.f32 %v334, %v592
      %v657 = vsub.f32 %v335, %v593
      %v658 = vsub.f32 %v336, %v594
      %v659 = vsub.f32 %v337, %v595
      %v660 = vsub.f32 %v338, %v596
      %v661 = vsub.f32 %v339, %v597
      %v662 = vsub.f32 %v340, %v598
      %v663 = vsub.f32 %v341, %v599
      %v664 = vsub.f32 %v342, %v600
      %v665 = vsub.f32 %v343, %v601
      %v666 = vsub.f32 %v344, %v602
      %v667 = vsub.f32 %v345, %v603
      %v668 = vsub.f32 %v346, %v604
      %v669 = vsub.f32 %v347, %v605
      %v670 = vsub.f32 %v348, %v606
      %v671 = vsub.f32 %v349, %v607
      %v672 = vsub.f32 %v350, %v608
      %v673 = vsub.f32 %v351, %v609
      %v674 = vsub.f32 %v352, %v610
      %v675 = vsub.f32 %v353, %v611
      %v676 = vsub.f32 %v354, %v612
      %v677 = vsub.f32 %v355, %v613
      %v678 = vsub.f32 %v356, %v614
      %v679 = vsub.f32 %v357, %v615
      %v680 = vsub.f32 %v358, %v616
      %v681 = vsub.f32 %v359, %v617
      %v682 = vsub.f32 %v360, %v618
      %v683 = vsub.f32 %v361, %v619
      %v684 = vsub.f32 %v362, %v620
      %v685 = vsub.f32 %v363, %v621
      %v686 = vsub.f32 %v364, %v622
      %v687 = vsub.f32 %v365, %v623
      %v688 = vsub.f32 %v366, %v624
      %v689 = vsub.f32 %v367, %v625
      %v690 = vsub.f32 %v368, %v626
      %v691 = vsub.f32 %v369, %v627
      %v692 = vsub.f32 %v370, %v628
      %v693 = vsub.f32 %v371, %v629
      %v694 = vsub.f32 %v372, %v630
      %v695 = vsub.f32 %v373, %v631
      %v696 = vsub.f32 %v374, %v632
      %v697 = vsub.f32 %v375, %v633
      %v698 = vsub.f32 %v376, %v634
      %v699 = vsub.f32 %v377, %v635
      %v700 = vsub.f32 %v378, %v636
      %v701 = vsub.f32 %v379, %v637
      %v702 = vsub.f32 %v380, %v638
      %v703 = vsub.f32 %v381, %v639
      %v704 = vmul.f32 %v640, %v640
      %v705 = vmul.f32 %v641, %v641
      %v706 = vmul.f32 %v642, %v642
      %v707 = vmul.f32 %v643, %v643
      %v708 = vmul.f32 %v644, %v644
      %v709 = vmul.f32 %v645, %v645
      %v710 = vmul.f32 %v646, %v646
      %v711 = vmul.f32 %v647, %v647
      %v712 = vmul.f32 %v648, %v648
      %v713 = vmul.f32 %v649, %v649
      %v714 = vmul.f32 %v650, %v650
      %v715 = vmul.f32 %v651, %v651
      %v716 = vmul.f32 %v652, %v652
      %v717 = vmul.f32 %v653, %v653
      %v718 = vmul.f32 %v654, %v654
      %v719 = vmul.f32 %v655, %v655
      %v720 = vmul.f32 %v656, %v656
      %v721 = vmul.f32 %v657, %v657
      %v722 = vmul.f32 %v658, %v658
      %v723 = vmul.f32 %v659, %v659
      %v724 = vmul.f32 %v660, %v660
      %v725 = vmul.f32 %v661, %v661
      %v726 = vmul.f32 %v662, %v662
      %v727 = vmul.f32 %v663, %v663
      %v728 = vmul.f32 %v664, %v664
      %v729 = vmul.f32 %v665, %v665
      %v730 = vmul.f32 %v666, %v666
      %v731 = vmul.f32 %v667, %v667
      %v732 = vmul.f32 %v668, %v668
      %v733 = vmul.f32 %v669, %v669
      %v734 = vmul.f32 %v670, %v670
      %v735 = vmul.f32 %v671, %v671
      %v736 = vmul.f32 %v672, %v672
      %v737 = vmul.f32 %v673, %v673
      %v738 = vmul.f32 %v674, %v674
      %v739 = vmul.f32 %v675, %v675
      %v740 = vmul.f32 %v676, %v676
      %v741 = vmul.f32 %v677, %v677
      %v742 = vmul.f32 %v678, %v678
      %v743 = vmul.f32 %v679, %v679
      %v744 = vmul.f32 %v680, %v680
      %v745 = vmul.f32 %v681, %v681
      %v746 = vmul.f32 %v682, %v682
      %v747 = vmul.f32 %v683, %v683
      %v748 = vmul.f32 %v684, %v684
      %v749 = vmul.f32 %v685, %v685
      %v750 = vmul.f32 %v686, %v686
      %v751 = vmul.f32 %v687, %v687
      %v752 = vmul.f32 %v688, %v688
      %v753 = vmul.f32 %v689, %v689
      %v754 = vmul.f32 %v690, %v690
      %v755 = vmul.f32 %v691, %v691
      %v756 = vmul.f32 %v692, %v692
      %v757 = vmul.f32 %v693, %v693
      %v758 = vmul.f32 %v694, %v694
      %v759 = vmul.f32 %v695, %v695
      %v760 = vmul.f32 %v696, %v696
      %v761 = vmul.f32 %v697, %v697
      %v762 = vmul.f32 %v698, %v698
      %v763 = vmul.f32 %v699, %v699
      %v764 = vmul.f32 %v700, %v700
      %v765 = vmul.f32 %v701, %v701
      %v766 = vmul.f32 %v702, %v702
      %v767 = vmul.f32 %v703, %v703
      %v768 = vsel %vm382, %v704, 0.0
      %769 = vadd.xlane.f32.xlu0 %v768
      %v770 = vpop.xlane.xlu0 %769
      %v771 = vsel %vm382, %v705, 0.0
      %772 = vadd.xlane.f32.xlu0 %v771
      %v773 = vpop.xlane.xlu0 %772
      %v774 = vsel %vm382, %v706, 0.0
      %775 = vadd.xlane.f32.xlu0 %v774
      %v776 = vpop.xlane.xlu0 %775
      %v777 = vsel %vm382, %v707, 0.0
      %778 = vadd.xlane.f32.xlu0 %v777
      %v779 = vpop.xlane.xlu0 %778
      %v780 = vsel %vm382, %v708, 0.0
      %781 = vadd.xlane.f32.xlu0 %v780
      %v782 = vpop.xlane.xlu0 %781
      %v783 = vsel %vm382, %v709, 0.0
      %784 = vadd.xlane.f32.xlu0 %v783
      %v785 = vpop.xlane.xlu0 %784
      %v786 = vsel %vm382, %v710, 0.0
      %787 = vadd.xlane.f32.xlu0 %v786
      %v788 = vpop.xlane.xlu0 %787
      %v789 = vsel %vm382, %v711, 0.0
      %790 = vadd.xlane.f32.xlu0 %v789
      %v791 = vpop.xlane.xlu0 %790
      %v792 = vsel %vm382, %v712, 0.0
      %793 = vadd.xlane.f32.xlu0 %v792
      %v794 = vpop.xlane.xlu0 %793
      %v795 = vsel %vm382, %v713, 0.0
      %796 = vadd.xlane.f32.xlu0 %v795
      %v797 = vpop.xlane.xlu0 %796
      %v798 = vsel %vm382, %v714, 0.0
      %799 = vadd.xlane.f32.xlu0 %v798
      %v800 = vpop.xlane.xlu0 %799
      %v801 = vsel %vm382, %v715, 0.0
      %802 = vadd.xlane.f32.xlu0 %v801
      %v803 = vpop.xlane.xlu0 %802
      %v804 = vsel %vm382, %v716, 0.0
      %805 = vadd.xlane.f32.xlu0 %v804
      %v806 = vpop.xlane.xlu0 %805
      %v807 = vsel %vm382, %v717, 0.0
      %808 = vadd.xlane.f32.xlu0 %v807
      %v809 = vpop.xlane.xlu0 %808
      %v810 = vsel %vm382, %v718, 0.0
      %811 = vadd.xlane.f32.xlu0 %v810
      %v812 = vpop.xlane.xlu0 %811
      %v813 = vsel %vm382, %v719, 0.0
      %814 = vadd.xlane.f32.xlu0 %v813
      %v815 = vpop.xlane.xlu0 %814
      %v816 = vsel %vm382, %v720, 0.0
      %817 = vadd.xlane.f32.xlu0 %v816
      %v818 = vpop.xlane.xlu0 %817
      %v819 = vsel %vm382, %v721, 0.0
      %820 = vadd.xlane.f32.xlu0 %v819
      %v821 = vpop.xlane.xlu0 %820
      %v822 = vsel %vm382, %v722, 0.0
      %823 = vadd.xlane.f32.xlu0 %v822
      %v824 = vpop.xlane.xlu0 %823
      %v825 = vsel %vm382, %v723, 0.0
      %826 = vadd.xlane.f32.xlu0 %v825
      %v827 = vpop.xlane.xlu0 %826
      %v828 = vsel %vm382, %v724, 0.0
      %829 = vadd.xlane.f32.xlu0 %v828
      %v830 = vpop.xlane.xlu0 %829
      %v831 = vsel %vm382, %v725, 0.0
      %832 = vadd.xlane.f32.xlu0 %v831
      %v833 = vpop.xlane.xlu0 %832
      %v834 = vsel %vm382, %v726, 0.0
      %835 = vadd.xlane.f32.xlu0 %v834
      %v836 = vpop.xlane.xlu0 %835
      %v837 = vsel %vm382, %v727, 0.0
      %838 = vadd.xlane.f32.xlu0 %v837
      %v839 = vpop.xlane.xlu0 %838
      %v840 = vsel %vm382, %v728, 0.0
      %841 = vadd.xlane.f32.xlu0 %v840
      %v842 = vpop.xlane.xlu0 %841
      %v843 = vsel %vm382, %v729, 0.0
      %844 = vadd.xlane.f32.xlu0 %v843
      %v845 = vpop.xlane.xlu0 %844
      %v846 = vsel %vm382, %v730, 0.0
      %847 = vadd.xlane.f32.xlu0 %v846
      %v848 = vpop.xlane.xlu0 %847
      %v849 = vsel %vm382, %v731, 0.0
      %850 = vadd.xlane.f32.xlu0 %v849
      %v851 = vpop.xlane.xlu0 %850
      %v852 = vsel %vm382, %v732, 0.0
      %853 = vadd.xlane.f32.xlu0 %v852
      %v854 = vpop.xlane.xlu0 %853
      %v855 = vsel %vm382, %v733, 0.0
      %856 = vadd.xlane.f32.xlu0 %v855
      %v857 = vpop.xlane.xlu0 %856
      %v858 = vsel %vm382, %v734, 0.0
      %859 = vadd.xlane.f32.xlu0 %v858
      %v860 = vpop.xlane.xlu0 %859
      %v861 = vsel %vm382, %v735, 0.0
      %862 = vadd.xlane.f32.xlu0 %v861
      %v863 = vpop.xlane.xlu0 %862
      %v864 = vsel %vm382, %v736, 0.0
      %865 = vadd.xlane.f32.xlu0 %v864
      %v866 = vpop.xlane.xlu0 %865
      %v867 = vsel %vm382, %v737, 0.0
      %868 = vadd.xlane.f32.xlu0 %v867
      %v869 = vpop.xlane.xlu0 %868
      %v870 = vsel %vm382, %v738, 0.0
      %871 = vadd.xlane.f32.xlu0 %v870
      %v872 = vpop.xlane.xlu0 %871
      %v873 = vsel %vm382, %v739, 0.0
      %874 = vadd.xlane.f32.xlu0 %v873
      %v875 = vpop.xlane.xlu0 %874
      %v876 = vsel %vm382, %v740, 0.0
      %877 = vadd.xlane.f32.xlu0 %v876
      %v878 = vpop.xlane.xlu0 %877
      %v879 = vsel %vm382, %v741, 0.0
      %880 = vadd.xlane.f32.xlu0 %v879
      %v881 = vpop.xlane.xlu0 %880
      %v882 = vsel %vm382, %v742, 0.0
      %883 = vadd.xlane.f32.xlu0 %v882
      %v884 = vpop.xlane.xlu0 %883
      %v885 = vsel %vm382, %v743, 0.0
      %886 = vadd.xlane.f32.xlu0 %v885
      %v887 = vpop.xlane.xlu0 %886
      %v888 = vsel %vm382, %v744, 0.0
      %889 = vadd.xlane.f32.xlu0 %v888
      %v890 = vpop.xlane.xlu0 %889
      %v891 = vsel %vm382, %v745, 0.0
      %892 = vadd.xlane.f32.xlu0 %v891
      %v893 = vpop.xlane.xlu0 %892
      %v894 = vsel %vm382, %v746, 0.0
      %895 = vadd.xlane.f32.xlu0 %v894
      %v896 = vpop.xlane.xlu0 %895
      %v897 = vsel %vm382, %v747, 0.0
      %898 = vadd.xlane.f32.xlu0 %v897
      %v899 = vpop.xlane.xlu0 %898
      %v900 = vsel %vm382, %v748, 0.0
      %901 = vadd.xlane.f32.xlu0 %v900
      %v902 = vpop.xlane.xlu0 %901
      %v903 = vsel %vm382, %v749, 0.0
      %904 = vadd.xlane.f32.xlu0 %v903
      %v905 = vpop.xlane.xlu0 %904
      %v906 = vsel %vm382, %v750, 0.0
      %907 = vadd.xlane.f32.xlu0 %v906
      %v908 = vpop.xlane.xlu0 %907
      %v909 = vsel %vm382, %v751, 0.0
      %910 = vadd.xlane.f32.xlu0 %v909
      %v911 = vpop.xlane.xlu0 %910
      %v912 = vsel %vm382, %v752, 0.0
      %913 = vadd.xlane.f32.xlu0 %v912
      %v914 = vpop.xlane.xlu0 %913
      %v915 = vsel %vm382, %v753, 0.0
      %916 = vadd.xlane.f32.xlu0 %v915
      %v917 = vpop.xlane.xlu0 %916
      %v918 = vsel %vm382, %v754, 0.0
      %919 = vadd.xlane.f32.xlu0 %v918
      %v920 = vpop.xlane.xlu0 %919
      %v921 = vsel %vm382, %v755, 0.0
      %922 = vadd.xlane.f32.xlu0 %v921
      %v923 = vpop.xlane.xlu0 %922
      %v924 = vsel %vm382, %v756, 0.0
      %925 = vadd.xlane.f32.xlu0 %v924
      %v926 = vpop.xlane.xlu0 %925
      %v927 = vsel %vm382, %v757, 0.0
      %928 = vadd.xlane.f32.xlu0 %v927
      %v929 = vpop.xlane.xlu0 %928
      %v930 = vsel %vm382, %v758, 0.0
      %931 = vadd.xlane.f32.xlu0 %v930
      %v932 = vpop.xlane.xlu0 %931
      %v933 = vsel %vm382, %v759, 0.0
      %934 = vadd.xlane.f32.xlu0 %v933
      %v935 = vpop.xlane.xlu0 %934
      %v936 = vsel %vm382, %v760, 0.0
      %937 = vadd.xlane.f32.xlu0 %v936
      %v938 = vpop.xlane.xlu0 %937
      %v939 = vsel %vm382, %v761, 0.0
      %940 = vadd.xlane.f32.xlu0 %v939
      %v941 = vpop.xlane.xlu0 %940
      %v942 = vsel %vm382, %v762, 0.0
      %943 = vadd.xlane.f32.xlu0 %v942
      %v944 = vpop.xlane.xlu0 %943
      %v945 = vsel %vm382, %v763, 0.0
      %946 = vadd.xlane.f32.xlu0 %v945
      %v947 = vpop.xlane.xlu0 %946
      %v948 = vsel %vm382, %v764, 0.0
      %949 = vadd.xlane.f32.xlu0 %v948
      %v950 = vpop.xlane.xlu0 %949
      %v951 = vsel %vm382, %v765, 0.0
      %952 = vadd.xlane.f32.xlu0 %v951
      %v953 = vpop.xlane.xlu0 %952
      %v954 = vsel %vm382, %v766, 0.0
      %955 = vadd.xlane.f32.xlu0 %v954
      %v956 = vpop.xlane.xlu0 %955
      %v957 = vsel %vm382, %v767, 0.0
      %958 = vadd.xlane.f32.xlu0 %v957
      %v959 = vpop.xlane.xlu0 %958
      %v960 = vmul.f32 %v770, %v575
      %v961 = vmul.f32 %v773, %v575
      %v962 = vmul.f32 %v776, %v575
      %v963 = vmul.f32 %v779, %v575
      %v964 = vmul.f32 %v782, %v575
      %v965 = vmul.f32 %v785, %v575
      %v966 = vmul.f32 %v788, %v575
      %v967 = vmul.f32 %v791, %v575
      %v968 = vmul.f32 %v794, %v575
      %v969 = vmul.f32 %v797, %v575
      %v970 = vmul.f32 %v800, %v575
      %v971 = vmul.f32 %v803, %v575
      %v972 = vmul.f32 %v806, %v575
      %v973 = vmul.f32 %v809, %v575
      %v974 = vmul.f32 %v812, %v575
      %v975 = vmul.f32 %v815, %v575
      %v976 = vmul.f32 %v818, %v575
      %v977 = vmul.f32 %v821, %v575
      %v978 = vmul.f32 %v824, %v575
      %v979 = vmul.f32 %v827, %v575
      %v980 = vmul.f32 %v830, %v575
      %v981 = vmul.f32 %v833, %v575
      %v982 = vmul.f32 %v836, %v575
      %v983 = vmul.f32 %v839, %v575
      %v984 = vmul.f32 %v842, %v575
      %v985 = vmul.f32 %v845, %v575
      %v986 = vmul.f32 %v848, %v575
      %v987 = vmul.f32 %v851, %v575
      %v988 = vmul.f32 %v854, %v575
      %v989 = vmul.f32 %v857, %v575
      %v990 = vmul.f32 %v860, %v575
      %v991 = vmul.f32 %v863, %v575
      %v992 = vmul.f32 %v866, %v575
      %v993 = vmul.f32 %v869, %v575
      %v994 = vmul.f32 %v872, %v575
      %v995 = vmul.f32 %v875, %v575
      %v996 = vmul.f32 %v878, %v575
      %v997 = vmul.f32 %v881, %v575
      %v998 = vmul.f32 %v884, %v575
      %v999 = vmul.f32 %v887, %v575
      %v1000 = vmul.f32 %v890, %v575
      %v1001 = vmul.f32 %v893, %v575
      %v1002 = vmul.f32 %v896, %v575
      %v1003 = vmul.f32 %v899, %v575
      %v1004 = vmul.f32 %v902, %v575
      %v1005 = vmul.f32 %v905, %v575
      %v1006 = vmul.f32 %v908, %v575
      %v1007 = vmul.f32 %v911, %v575
      %v1008 = vmul.f32 %v914, %v575
      %v1009 = vmul.f32 %v917, %v575
      %v1010 = vmul.f32 %v920, %v575
      %v1011 = vmul.f32 %v923, %v575
      %v1012 = vmul.f32 %v926, %v575
      %v1013 = vmul.f32 %v929, %v575
      %v1014 = vmul.f32 %v932, %v575
      %v1015 = vmul.f32 %v935, %v575
      %v1016 = vmul.f32 %v938, %v575
      %v1017 = vmul.f32 %v941, %v575
      %v1018 = vmul.f32 %v944, %v575
      %v1019 = vmul.f32 %v947, %v575
      %v1020 = vmul.f32 %v950, %v575
      %v1021 = vmul.f32 %v953, %v575
      %v1022 = vmul.f32 %v956, %v575
      %v1023 = vmul.f32 %v959, %v575
      %v1024 = vadd.f32 %v960, 1e-05
      %v1025 = vadd.f32 %v961, 1e-05
      %v1026 = vadd.f32 %v962, 1e-05
      %v1027 = vadd.f32 %v963, 1e-05
      %v1028 = vadd.f32 %v964, 1e-05
      %v1029 = vadd.f32 %v965, 1e-05
      %v1030 = vadd.f32 %v966, 1e-05
      %v1031 = vadd.f32 %v967, 1e-05
      %v1032 = vadd.f32 %v968, 1e-05
      %v1033 = vadd.f32 %v969, 1e-05
      %v1034 = vadd.f32 %v970, 1e-05
      %v1035 = vadd.f32 %v971, 1e-05
      %v1036 = vadd.f32 %v972, 1e-05
      %v1037 = vadd.f32 %v973, 1e-05
      %v1038 = vadd.f32 %v974, 1e-05
      %v1039 = vadd.f32 %v975, 1e-05
      %v1040 = vadd.f32 %v976, 1e-05
      %v1041 = vadd.f32 %v977, 1e-05
      %v1042 = vadd.f32 %v978, 1e-05
      %v1043 = vadd.f32 %v979, 1e-05
      %v1044 = vadd.f32 %v980, 1e-05
      %v1045 = vadd.f32 %v981, 1e-05
      %v1046 = vadd.f32 %v982, 1e-05
      %v1047 = vadd.f32 %v983, 1e-05
      %v1048 = vadd.f32 %v984, 1e-05
      %v1049 = vadd.f32 %v985, 1e-05
      %v1050 = vadd.f32 %v986, 1e-05
      %v1051 = vadd.f32 %v987, 1e-05
      %v1052 = vadd.f32 %v988, 1e-05
      %v1053 = vadd.f32 %v989, 1e-05
      %v1054 = vadd.f32 %v990, 1e-05
      %v1055 = vadd.f32 %v991, 1e-05
      %v1056 = vadd.f32 %v992, 1e-05
      %v1057 = vadd.f32 %v993, 1e-05
      %v1058 = vadd.f32 %v994, 1e-05
      %v1059 = vadd.f32 %v995, 1e-05
      %v1060 = vadd.f32 %v996, 1e-05
      %v1061 = vadd.f32 %v997, 1e-05
      %v1062 = vadd.f32 %v998, 1e-05
      %v1063 = vadd.f32 %v999, 1e-05
      %v1064 = vadd.f32 %v1000, 1e-05
      %v1065 = vadd.f32 %v1001, 1e-05
      %v1066 = vadd.f32 %v1002, 1e-05
      %v1067 = vadd.f32 %v1003, 1e-05
      %v1068 = vadd.f32 %v1004, 1e-05
      %v1069 = vadd.f32 %v1005, 1e-05
      %v1070 = vadd.f32 %v1006, 1e-05
      %v1071 = vadd.f32 %v1007, 1e-05
      %v1072 = vadd.f32 %v1008, 1e-05
      %v1073 = vadd.f32 %v1009, 1e-05
      %v1074 = vadd.f32 %v1010, 1e-05
      %v1075 = vadd.f32 %v1011, 1e-05
      %v1076 = vadd.f32 %v1012, 1e-05
      %v1077 = vadd.f32 %v1013, 1e-05
      %v1078 = vadd.f32 %v1014, 1e-05
      %v1079 = vadd.f32 %v1015, 1e-05
      %v1080 = vadd.f32 %v1016, 1e-05
      %v1081 = vadd.f32 %v1017, 1e-05
      %v1082 = vadd.f32 %v1018, 1e-05
      %v1083 = vadd.f32 %v1019, 1e-05
      %v1084 = vadd.f32 %v1020, 1e-05
      %v1085 = vadd.f32 %v1021, 1e-05
      %v1086 = vadd.f32 %v1022, 1e-05
      %v1087 = vadd.f32 %v1023, 1e-05
      %v1088 = vrsqrt.pop %v1024
      %v1089 = vrsqrt.pop %v1025
      %v1090 = vrsqrt.pop %v1026
      %v1091 = vrsqrt.pop %v1027
      %v1092 = vrsqrt.pop %v1028
      %v1093 = vrsqrt.pop %v1029
      %v1094 = vrsqrt.pop %v1030
      %v1095 = vrsqrt.pop %v1031
      %v1096 = vrsqrt.pop %v1032
      %v1097 = vrsqrt.pop %v1033
      %v1098 = vrsqrt.pop %v1034
      %v1099 = vrsqrt.pop %v1035
      %v1100 = vrsqrt.pop %v1036
      %v1101 = vrsqrt.pop %v1037
      %v1102 = vrsqrt.pop %v1038
      %v1103 = vrsqrt.pop %v1039
      %v1104 = vrsqrt.pop %v1040
      %v1105 = vrsqrt.pop %v1041
      %v1106 = vrsqrt.pop %v1042
      %v1107 = vrsqrt.pop %v1043
      %v1108 = vrsqrt.pop %v1044
      %v1109 = vrsqrt.pop %v1045
      %v1110 = vrsqrt.pop %v1046
      %v1111 = vrsqrt.pop %v1047
      %v1112 = vrsqrt.pop %v1048
      %v1113 = vrsqrt.pop %v1049
      %v1114 = vrsqrt.pop %v1050
      %v1115 = vrsqrt.pop %v1051
      %v1116 = vrsqrt.pop %v1052
      %v1117 = vrsqrt.pop %v1053
      %v1118 = vrsqrt.pop %v1054
      %v1119 = vrsqrt.pop %v1055
      %v1120 = vrsqrt.pop %v1056
      %v1121 = vrsqrt.pop %v1057
      %v1122 = vrsqrt.pop %v1058
      %v1123 = vrsqrt.pop %v1059
      %v1124 = vrsqrt.pop %v1060
      %v1125 = vrsqrt.pop %v1061
      %v1126 = vrsqrt.pop %v1062
      %v1127 = vrsqrt.pop %v1063
      %v1128 = vrsqrt.pop %v1064
      %v1129 = vrsqrt.pop %v1065
      %v1130 = vrsqrt.pop %v1066
      %v1131 = vrsqrt.pop %v1067
      %v1132 = vrsqrt.pop %v1068
      %v1133 = vrsqrt.pop %v1069
      %v1134 = vrsqrt.pop %v1070
      %v1135 = vrsqrt.pop %v1071
      %v1136 = vrsqrt.pop %v1072
      %v1137 = vrsqrt.pop %v1073
      %v1138 = vrsqrt.pop %v1074
      %v1139 = vrsqrt.pop %v1075
      %v1140 = vrsqrt.pop %v1076
      %v1141 = vrsqrt.pop %v1077
      %v1142 = vrsqrt.pop %v1078
      %v1143 = vrsqrt.pop %v1079
      %v1144 = vrsqrt.pop %v1080
      %v1145 = vrsqrt.pop %v1081
      %v1146 = vrsqrt.pop %v1082
      %v1147 = vrsqrt.pop %v1083
      %v1148 = vrsqrt.pop %v1084
      %v1149 = vrsqrt.pop %v1085
      %v1150 = vrsqrt.pop %v1086
      %v1151 = vrsqrt.pop %v1087
      %v1152 = vmul.f32 %v640, %v1088
      %v1153 = vmul.f32 %v641, %v1089
      %v1154 = vmul.f32 %v642, %v1090
      %v1155 = vmul.f32 %v643, %v1091
      %v1156 = vmul.f32 %v644, %v1092
      %v1157 = vmul.f32 %v645, %v1093
      %v1158 = vmul.f32 %v646, %v1094
      %v1159 = vmul.f32 %v647, %v1095
      %v1160 = vmul.f32 %v648, %v1096
      %v1161 = vmul.f32 %v649, %v1097
      %v1162 = vmul.f32 %v650, %v1098
      %v1163 = vmul.f32 %v651, %v1099
      %v1164 = vmul.f32 %v652, %v1100
      %v1165 = vmul.f32 %v653, %v1101
      %v1166 = vmul.f32 %v654, %v1102
      %v1167 = vmul.f32 %v655, %v1103
      %v1168 = vmul.f32 %v656, %v1104
      %v1169 = vmul.f32 %v657, %v1105
      %v1170 = vmul.f32 %v658, %v1106
      %v1171 = vmul.f32 %v659, %v1107
      %v1172 = vmul.f32 %v660, %v1108
      %v1173 = vmul.f32 %v661, %v1109
      %v1174 = vmul.f32 %v662, %v1110
      %v1175 = vmul.f32 %v663, %v1111
      %v1176 = vmul.f32 %v664, %v1112
      %v1177 = vmul.f32 %v665, %v1113
      %v1178 = vmul.f32 %v666, %v1114
      %v1179 = vmul.f32 %v667, %v1115
      %v1180 = vmul.f32 %v668, %v1116
      %v1181 = vmul.f32 %v669, %v1117
      %v1182 = vmul.f32 %v670, %v1118
      %v1183 = vmul.f32 %v671, %v1119
      %v1184 = vmul.f32 %v672, %v1120
      %v1185 = vmul.f32 %v673, %v1121
      %v1186 = vmul.f32 %v674, %v1122
      %v1187 = vmul.f32 %v675, %v1123
      %v1188 = vmul.f32 %v676, %v1124
      %v1189 = vmul.f32 %v677, %v1125
      %v1190 = vmul.f32 %v678, %v1126
      %v1191 = vmul.f32 %v679, %v1127
      %v1192 = vmul.f32 %v680, %v1128
      %v1193 = vmul.f32 %v681, %v1129
      %v1194 = vmul.f32 %v682, %v1130
      %v1195 = vmul.f32 %v683, %v1131
      %v1196 = vmul.f32 %v684, %v1132
      %v1197 = vmul.f32 %v685, %v1133
      %v1198 = vmul.f32 %v686, %v1134
      %v1199 = vmul.f32 %v687, %v1135
      %v1200 = vmul.f32 %v688, %v1136
      %v1201 = vmul.f32 %v689, %v1137
      %v1202 = vmul.f32 %v690, %v1138
      %v1203 = vmul.f32 %v691, %v1139
      %v1204 = vmul.f32 %v692, %v1140
      %v1205 = vmul.f32 %v693, %v1141
      %v1206 = vmul.f32 %v694, %v1142
      %v1207 = vmul.f32 %v695, %v1143
      %v1208 = vmul.f32 %v696, %v1144
      %v1209 = vmul.f32 %v697, %v1145
      %v1210 = vmul.f32 %v698, %v1146
      %v1211 = vmul.f32 %v699, %v1147
      %v1212 = vmul.f32 %v700, %v1148
      %v1213 = vmul.f32 %v701, %v1149
      %v1214 = vmul.f32 %v702, %v1150
      %v1215 = vmul.f32 %v703, %v1151
      %v1216 = vld [vmem:[%s2] sm:$0x1]
      %v1218 = vlaneseq
      %v1219 = vshrl.u32 %v1218, 7
      %v1220 = vsub.s32 0, %v1219
      %v1221 = vrot.slane %v1216, %v1220
      %v1223 = vmul.f32 %v1152, %v1221
      %v1224 = vmul.f32 %v1153, %v1221
      %v1225 = vmul.f32 %v1154, %v1221
      %v1226 = vmul.f32 %v1155, %v1221
      %v1227 = vmul.f32 %v1156, %v1221
      %v1228 = vmul.f32 %v1157, %v1221
      %v1229 = vmul.f32 %v1158, %v1221
      %v1230 = vmul.f32 %v1159, %v1221
      %v1231 = vmul.f32 %v1160, %v1221
      %v1232 = vmul.f32 %v1161, %v1221
      %v1233 = vmul.f32 %v1162, %v1221
      %v1234 = vmul.f32 %v1163, %v1221
      %v1235 = vmul.f32 %v1164, %v1221
      %v1236 = vmul.f32 %v1165, %v1221
      %v1237 = vmul.f32 %v1166, %v1221
      %v1238 = vmul.f32 %v1167, %v1221
      %v1239 = vmul.f32 %v1168, %v1221
      %v1240 = vmul.f32 %v1169, %v1221
      %v1241 = vmul.f32 %v1170, %v1221
      %v1242 = vmul.f32 %v1171, %v1221
      %v1243 = vmul.f32 %v1172, %v1221
      %v1244 = vmul.f32 %v1173, %v1221
      %v1245 = vmul.f32 %v1174, %v1221
      %v1246 = vmul.f32 %v1175, %v1221
      %v1247 = vmul.f32 %v1176, %v1221
      %v1248 = vmul.f32 %v1177, %v1221
      %v1249 = vmul.f32 %v1178, %v1221
      %v1250 = vmul.f32 %v1179, %v1221
      %v1251 = vmul.f32 %v1180, %v1221
      %v1252 = vmul.f32 %v1181, %v1221
      %v1253 = vmul.f32 %v1182, %v1221
      %v1254 = vmul.f32 %v1183, %v1221
      %v1255 = vmul.f32 %v1184, %v1221
      %v1256 = vmul.f32 %v1185, %v1221
      %v1257 = vmul.f32 %v1186, %v1221
      %v1258 = vmul.f32 %v1187, %v1221
      %v1259 = vmul.f32 %v1188, %v1221
      %v1260 = vmul.f32 %v1189, %v1221
      %v1261 = vmul.f32 %v1190, %v1221
      %v1262 = vmul.f32 %v1191, %v1221
      %v1263 = vmul.f32 %v1192, %v1221
      %v1264 = vmul.f32 %v1193, %v1221
      %v1265 = vmul.f32 %v1194, %v1221
      %v1266 = vmul.f32 %v1195, %v1221
      %v1267 = vmul.f32 %v1196, %v1221
      %v1268 = vmul.f32 %v1197, %v1221
      %v1269 = vmul.f32 %v1198, %v1221
      %v1270 = vmul.f32 %v1199, %v1221
      %v1271 = vmul.f32 %v1200, %v1221
      %v1272 = vmul.f32 %v1201, %v1221
      %v1273 = vmul.f32 %v1202, %v1221
      %v1274 = vmul.f32 %v1203, %v1221
      %v1275 = vmul.f32 %v1204, %v1221
      %v1276 = vmul.f32 %v1205, %v1221
      %v1277 = vmul.f32 %v1206, %v1221
      %v1278 = vmul.f32 %v1207, %v1221
      %v1279 = vmul.f32 %v1208, %v1221
      %v1280 = vmul.f32 %v1209, %v1221
      %v1281 = vmul.f32 %v1210, %v1221
      %v1282 = vmul.f32 %v1211, %v1221
      %v1283 = vmul.f32 %v1212, %v1221
      %v1284 = vmul.f32 %v1213, %v1221
      %v1285 = vmul.f32 %v1214, %v1221
      %v1286 = vmul.f32 %v1215, %v1221
      %v1287 = vld [vmem:[%s3] sm:$0x1]
      %v1289 = vlaneseq
      %v1290 = vshrl.u32 %v1289, 7
      %v1291 = vsub.s32 0, %v1290
      %v1292 = vrot.slane %v1287, %v1291
      %v1294 = vadd.f32 %v1223, %v1292
      %v1295 = vadd.f32 %v1224, %v1292
      %v1296 = vadd.f32 %v1225, %v1292
      %v1297 = vadd.f32 %v1226, %v1292
      %v1298 = vadd.f32 %v1227, %v1292
      %v1299 = vadd.f32 %v1228, %v1292
      %v1300 = vadd.f32 %v1229, %v1292
      %v1301 = vadd.f32 %v1230, %v1292
      %v1302 = vadd.f32 %v1231, %v1292
      %v1303 = vadd.f32 %v1232, %v1292
      %v1304 = vadd.f32 %v1233, %v1292
      %v1305 = vadd.f32 %v1234, %v1292
      %v1306 = vadd.f32 %v1235, %v1292
      %v1307 = vadd.f32 %v1236, %v1292
      %v1308 = vadd.f32 %v1237, %v1292
      %v1309 = vadd.f32 %v1238, %v1292
      %v1310 = vadd.f32 %v1239, %v1292
      %v1311 = vadd.f32 %v1240, %v1292
      %v1312 = vadd.f32 %v1241, %v1292
      %v1313 = vadd.f32 %v1242, %v1292
      %v1314 = vadd.f32 %v1243, %v1292
      %v1315 = vadd.f32 %v1244, %v1292
      %v1316 = vadd.f32 %v1245, %v1292
      %v1317 = vadd.f32 %v1246, %v1292
      %v1318 = vadd.f32 %v1247, %v1292
      %v1319 = vadd.f32 %v1248, %v1292
      %v1320 = vadd.f32 %v1249, %v1292
      %v1321 = vadd.f32 %v1250, %v1292
      %v1322 = vadd.f32 %v1251, %v1292
      %v1323 = vadd.f32 %v1252, %v1292
      %v1324 = vadd.f32 %v1253, %v1292
      %v1325 = vadd.f32 %v1254, %v1292
      %v1326 = vadd.f32 %v1255, %v1292
      %v1327 = vadd.f32 %v1256, %v1292
      %v1328 = vadd.f32 %v1257, %v1292
      %v1329 = vadd.f32 %v1258, %v1292
      %v1330 = vadd.f32 %v1259, %v1292
      %v1331 = vadd.f32 %v1260, %v1292
      %v1332 = vadd.f32 %v1261, %v1292
      %v1333 = vadd.f32 %v1262, %v1292
      %v1334 = vadd.f32 %v1263, %v1292
      %v1335 = vadd.f32 %v1264, %v1292
      %v1336 = vadd.f32 %v1265, %v1292
      %v1337 = vadd.f32 %v1266, %v1292
      %v1338 = vadd.f32 %v1267, %v1292
      %v1339 = vadd.f32 %v1268, %v1292
      %v1340 = vadd.f32 %v1269, %v1292
      %v1341 = vadd.f32 %v1270, %v1292
      %v1342 = vadd.f32 %v1271, %v1292
      %v1343 = vadd.f32 %v1272, %v1292
      %v1344 = vadd.f32 %v1273, %v1292
      %v1345 = vadd.f32 %v1274, %v1292
      %v1346 = vadd.f32 %v1275, %v1292
      %v1347 = vadd.f32 %v1276, %v1292
      %v1348 = vadd.f32 %v1277, %v1292
      %v1349 = vadd.f32 %v1278, %v1292
      %v1350 = vadd.f32 %v1279, %v1292
      %v1351 = vadd.f32 %v1280, %v1292
      %v1352 = vadd.f32 %v1281, %v1292
      %v1353 = vadd.f32 %v1282, %v1292
      %v1354 = vadd.f32 %v1283, %v1292
      %v1355 = vadd.f32 %v1284, %v1292
      %v1356 = vadd.f32 %v1285, %v1292
      %v1357 = vadd.f32 %v1286, %v1292
      %v1358 = vld [vmem:[%s4] sm:$0xff]
      %v1359 = vld [vmem:[%s4 + $0x8] sm:$0xff]
      %v1360 = vld [vmem:[%s4 + $0x10] sm:$0xff]
      %v1361 = vld [vmem:[%s4 + $0x18] sm:$0xff]
      %v1362 = vld [vmem:[%s5] sm:$0x1]
      %v1364 = vlaneseq
      %v1365 = vshrl.u32 %v1364, 7
      %v1366 = vsub.s32 0, %v1365
      %v1367 = vrot.slane %v1362, %v1366
      %v1370 = vsel %vm382, %v1294, 0
      %v1373 = vsel %vm382, %v1295, 0
      %v1376 = vsel %vm382, %v1296, 0
      %v1379 = vsel %vm382, %v1297, 0
      %v1382 = vsel %vm382, %v1298, 0
      %v1385 = vsel %vm382, %v1299, 0
      %v1388 = vsel %vm382, %v1300, 0
      %v1391 = vsel %vm382, %v1301, 0
      %v1394 = vsel %vm382, %v1302, 0
      %v1397 = vsel %vm382, %v1303, 0
      %v1400 = vsel %vm382, %v1304, 0
      %v1403 = vsel %vm382, %v1305, 0
      %v1406 = vsel %vm382, %v1306, 0
      %v1409 = vsel %vm382, %v1307, 0
      %v1412 = vsel %vm382, %v1308, 0
      %v1415 = vsel %vm382, %v1309, 0
      %v1418 = vsel %vm382, %v1310, 0
      %v1421 = vsel %vm382, %v1311, 0
      %v1424 = vsel %vm382, %v1312, 0
      %v1427 = vsel %vm382, %v1313, 0
      %v1430 = vsel %vm382, %v1314, 0
      %v1433 = vsel %vm382, %v1315, 0
      %v1436 = vsel %vm382, %v1316, 0
      %v1439 = vsel %vm382, %v1317, 0
      %v1442 = vsel %vm382, %v1318, 0
      %v1445 = vsel %vm382, %v1319, 0
      %v1448 = vsel %vm382, %v1320, 0
      %v1451 = vsel %vm382, %v1321, 0
      %v1454 = vsel %vm382, %v1322, 0
      %v1457 = vsel %vm382, %v1323, 0
      %v1460 = vsel %vm382, %v1324, 0
      %v1463 = vsel %vm382, %v1325, 0
      %v1466 = vsel %vm382, %v1326, 0
      %v1469 = vsel %vm382, %v1327, 0
      %v1472 = vsel %vm382, %v1328, 0
      %v1475 = vsel %vm382, %v1329, 0
      %v1478 = vsel %vm382, %v1330, 0
      %v1481 = vsel %vm382, %v1331, 0
      %v1484 = vsel %vm382, %v1332, 0
      %v1487 = vsel %vm382, %v1333, 0
      %v1490 = vsel %vm382, %v1334, 0
      %v1493 = vsel %vm382, %v1335, 0
      %v1496 = vsel %vm382, %v1336, 0
      %v1499 = vsel %vm382, %v1337, 0
      %v1502 = vsel %vm382, %v1338, 0
      %v1505 = vsel %vm382, %v1339, 0
      %v1508 = vsel %vm382, %v1340, 0
      %v1511 = vsel %vm382, %v1341, 0
      %v1514 = vsel %vm382, %v1342, 0
      %v1517 = vsel %vm382, %v1343, 0
      %v1520 = vsel %vm382, %v1344, 0
      %v1523 = vsel %vm382, %v1345, 0
      %v1526 = vsel %vm382, %v1346, 0
      %v1529 = vsel %vm382, %v1347, 0
      %v1532 = vsel %vm382, %v1348, 0
      %v1535 = vsel %vm382, %v1349, 0
      %v1538 = vsel %vm382, %v1350, 0
      %v1541 = vsel %vm382, %v1351, 0
      %v1544 = vsel %vm382, %v1352, 0
      %v1547 = vsel %vm382, %v1353, 0
      %v1550 = vsel %vm382, %v1354, 0
      %v1553 = vsel %vm382, %v1355, 0
      %v1556 = vsel %vm382, %v1356, 0
      %v1559 = vsel %vm382, %v1357, 0
      %1561 = vmatprep.subr.mxu0 0.0
      %1562 = vmatpush1.msra.mxu0 %v1358
      %1563 = vmatprep.subr.mxu0 0.0
      %1564 = vmatpush1.msra.mxu0 %v1359
      %1565 = vmatprep.subr.mxu0 0.0
      %1566 = vmatpush1.msra.mxu0 %v1360
      %1567 = vmatprep.subr.mxu0 0.0
      %1568 = vmatpush1.msra.mxu0 %v1361
      %1569 = vmatprep.subr.mxu0 0.0
      %1570 = vmatpush1.msra.mxu0 0.0
      %1571 = vmatprep.subr.mxu0 0.0
      %1572 = vmatpush1.msra.mxu0 0.0
      %1573 = vmatprep.subr.mxu0 0.0
      %1574 = vmatpush1.msra.mxu0 0.0
      %1575 = vmatprep.subr.mxu0 0.0
      %1576 = vmatpush1.msra.mxu0 0.0
      %1577 = vmatprep.subr.mxu0 0.0
      %1578 = vmatpush1.msra.mxu0 0.0
      %1579 = vmatprep.subr.mxu0 0.0
      %1580 = vmatpush1.msra.mxu0 0.0
      %1581 = vmatprep.subr.mxu0 0.0
      %1582 = vmatpush1.msra.mxu0 0.0
      %1583 = vmatprep.subr.mxu0 0.0
      %1584 = vmatpush1.msra.mxu0 0.0
      %1585 = vmatprep.subr.mxu0 0.0
      %1586 = vmatpush1.msra.mxu0 0.0
      %1587 = vmatprep.subr.mxu0 0.0
      %1588 = vmatpush1.msra.mxu0 0.0
      %1589 = vmatprep.subr.mxu0 0.0
      %1590 = vmatpush1.msra.mxu0 0.0
      %1591 = vmatprep.subr.mxu0 0.0
      %1592 = vmatpush1.msra.mxu0 0.0
      %1593 = vmatprep.subr.mxu0 0.0
      %1594 = vmatpush1.msra.mxu0 0.0
      %1595 = vmatprep.subr.mxu0 0.0
      %1596 = vmatpush1.msra.mxu0 0.0
      %1597 = vmatprep.subr.mxu0 0.0
      %1598 = vmatpush1.msra.mxu0 0.0
      %1599 = vmatprep.subr.mxu0 0.0
      %1600 = vmatpush1.msra.mxu0 0.0
      %1601 = vmatprep.subr.mxu0 0.0
      %1602 = vmatpush1.msra.mxu0 0.0
      %1603 = vmatprep.subr.mxu0 0.0
      %1604 = vmatpush1.msra.mxu0 0.0
      %1605 = vmatprep.subr.mxu0 0.0
      %1606 = vmatpush1.msra.mxu0 0.0
      %1607 = vmatprep.subr.mxu0 0.0
      %1608 = vmatpush1.msra.mxu0 0.0
      %1609 = vmatprep.subr.mxu0 0.0
      %1610 = vmatpush1.msra.mxu0 0.0
      %1611 = vmatprep.subr.mxu0 0.0
      %1612 = vmatpush1.msra.mxu0 0.0
      %1613 = vmatprep.subr.mxu0 0.0
      %1614 = vmatpush1.msra.mxu0 0.0
      %1615 = vmatprep.subr.mxu0 0.0
      %1616 = vmatpush1.msra.mxu0 0.0
      %1617 = vmatprep.subr.mxu0 0.0
      %1618 = vmatpush1.msra.mxu0 0.0
      %1619 = vmatprep.subr.mxu0 0.0
      %1620 = vmatpush1.msra.mxu0 0.0
      %1621 = vmatprep.subr.mxu0 0.0
      %1622 = vmatpush1.msra.mxu0 0.0
      %1623 = vmatprep.subr.mxu0 0.0
      %1624 = vmatpush1.msra.mxu0 0.0
      %1625 = vmatprep.mubr.f32.mxu0 0.0
      %1626 = vmatmul.mubr.f32.gmra.mrb[0].mxu0 %v1370
      %v1627 = vpop.f32.mrb[0].mxu0
      %v1628 = vadd.f32 %v1367, %v1627
      %v1629 = vpop.f32.mrb[0].mxu0
      %1630 = vmatprep.mubr.f32.mxu0 0.0
      %1631 = vmatmul.mubr.f32.gmra.mrb[0].mxu0 %v1373
      %v1632 = vpop.f32.mrb[0].mxu0
      %v1633 = vadd.f32 %v1367, %v1632
      %v1634 = vpop.f32.mrb[0].mxu0
      %1635 = vmatprep.mubr.f32.mxu0 0.0
      %1636 = vmatmul.mubr.f32.gmra.mrb[0].mxu0 %v1376
      %v1637 = vpop.f32.mrb[0].mxu0
      %v1638 = vadd.f32 %v1367, %v1637
      %v1639 = vpop.f32.mrb[0].mxu0
      %1640 = vmatprep.mubr.f32.mxu0 0.0
      %1641 = vmatmul.mubr.f32.gmra.mrb[0].mxu0 %v1379
      %v1642 = vpop.f32.mrb[0].mxu0
      %v1643 = vadd.f32 %v1367, %v1642
      %v1644 = vpop.f32.mrb[0].mxu0
      %1645 = vmatprep.mubr.f32.mxu0 0.0
      %1646 = vmatmul.mubr.f32.gmra.mrb[0].mxu0 %v1382
      %v1647 = vpop.f32.mrb[0].mxu0
      %v1648 = vadd.f32 %v1367, %v1647
      %v1649 = vpop.f32.mrb[0].mxu0
      %1650 = vmatprep.mubr.f32.mxu0 0.0
      %1651 = vmatmul.mubr.f32.gmra.mrb[0].mxu0 %v1385
      %v1652 = vpop.f32.mrb[0].mxu0
      %v1653 = vadd.f32 %v1367, %v1652
      %v1654 = vpop.f32.mrb[0].mxu0
      %1655 = vmatprep.mubr.f32.mxu0 0.0
      %1656 = vmatmul.mubr.f32.gmra.mrb[0].mxu0 %v1388
      %v1657 = vpop.f32.mrb[0].mxu0
      %v1658 = vadd.f32 %v1367, %v1657
      %v1659 = vpop.f32.mrb[0].mxu0
      %1660 = vmatprep.mubr.f32.mxu0 0.0
      %1661 = vmatmul.mubr.f32.gmra.mrb[0].mxu0 %v1391
      %v1662 = vpop.f32.mrb[0].mxu0
      %v1663 = vadd.f32 %v1367, %v1662
      %v1664 = vpop.f32.mrb[0].mxu0
      %1665 = vmatprep.mubr.f32.mxu0 0.0
      %1666 = vmatmul.mubr.f32.gmra.mrb[0].mxu0 %v1394
      %v1667 = vpop.f32.mrb[0].mxu0
      %v1668 = vadd.f32 %v1367, %v1667
      %v1669 = vpop.f32.mrb[0].mxu0
      %1670 = vmatprep.mubr.f32.mxu0 0.0
      %1671 = vmatmul.mubr.f32.gmra.mrb[0].mxu0 %v1397
      %v1672 = vpop.f32.mrb[0].mxu0
      %v1673 = vadd.f32 %v1367, %v1672
      %v1674 = vpop.f32.mrb[0].mxu0
      %1675 = vmatprep.mubr.f32.mxu0 0.0
      %1676 = vmatmul.mubr.f32.gmra.mrb[0].mxu0 %v1400
      %v1677 = vpop.f32.mrb[0].mxu0
      %v1678 = vadd.f32 %v1367, %v1677
      %v1679 = vpop.f32.mrb[0].mxu0
      %1680 = vmatprep.mubr.f32.mxu0 0.0
      %1681 = vmatmul.mubr.f32.gmra.mrb[0].mxu0 %v1403
      %v1682 = vpop.f32.mrb[0].mxu0
      %v1683 = vadd.f32 %v1367, %v1682
      %v1684 = vpop.f32.mrb[0].mxu0
      %1685 = vmatprep.mubr.f32.mxu0 0.0
      %1686 = vmatmul.mubr.f32.gmra.mrb[0].mxu0 %v1406
      %v1687 = vpop.f32.mrb[0].mxu0
      %v1688 = vadd.f32 %v1367, %v1687
      %v1689 = vpop.f32.mrb[0].mxu0
      %1690 = vmatprep.mubr.f32.mxu0 0.0
      %1691 = vmatmul.mubr.f32.gmra.mrb[0].mxu0 %v1409
      %v1692 = vpop.f32.mrb[0].mxu0
      %v1693 = vadd.f32 %v1367, %v1692
      %v1694 = vpop.f32.mrb[0].mxu0
      %1695 = vmatprep.mubr.f32.mxu0 0.0
      %1696 = vmatmul.mubr.f32.gmra.mrb[0].mxu0 %v1412
      %v1697 = vpop.f32.mrb[0].mxu0
      %v1698 = vadd.f32 %v1367, %v1697
      %v1699 = vpop.f32.mrb[0].mxu0
      %1700 = vmatprep.mubr.f32.mxu0 0.0
      %1701 = vmatmul.mubr.f32.gmra.mrb[0].mxu0 %v1415
      %v1702 = vpop.f32.mrb[0].mxu0
      %v1703 = vadd.f32 %v1367, %v1702
      %v1704 = vpop.f32.mrb[0].mxu0
      %1705 = vmatprep.mubr.f32.mxu0 0.0
      %1706 = vmatmul.mubr.f32.gmra.mrb[0].mxu0 %v1418
      %v1707 = vpop.f32.mrb[0].mxu0
      %v1708 = vadd.f32 %v1367, %v1707
      %v1709 = vpop.f32.mrb[0].mxu0
      %1710 = vmatprep.mubr.f32.mxu0 0.0
      %1711 = vmatmul.mubr.f32.gmra.mrb[0].mxu0 %v1421
      %v1712 = vpop.f32.mrb[0].mxu0
      %v1713 = vadd.f32 %v1367, %v1712
      %v1714 = vpop.f32.mrb[0].mxu0
      %1715 = vmatprep.mubr.f32.mxu0 0.0
      %1716 = vmatmul.mubr.f32.gmra.mrb[0].mxu0 %v1424
      %v1717 = vpop.f32.mrb[0].mxu0
      %v1718 = vadd.f32 %v1367, %v1717
      %v1719 = vpop.f32.mrb[0].mxu0
      %1720 = vmatprep.mubr.f32.mxu0 0.0
      %1721 = vmatmul.mubr.f32.gmra.mrb[0].mxu0 %v1427
      %v1722 = vpop.f32.mrb[0].mxu0
      %v1723 = vadd.f32 %v1367, %v1722
      %v1724 = vpop.f32.mrb[0].mxu0
      %1725 = vmatprep.mubr.f32.mxu0 0.0
      %1726 = vmatmul.mubr.f32.gmra.mrb[0].mxu0 %v1430
      %v1727 = vpop.f32.mrb[0].mxu0
      %v1728 = vadd.f32 %v1367, %v1727
      %v1729 = vpop.f32.mrb[0].mxu0
      %1730 = vmatprep.mubr.f32.mxu0 0.0
      %1731 = vmatmul.mubr.f32.gmra.mrb[0].mxu0 %v1433
      %v1732 = vpop.f32.mrb[0].mxu0
      %v1733 = vadd.f32 %v1367, %v1732
      %v1734 = vpop.f32.mrb[0].mxu0
      %1735 = vmatprep.mubr.f32.mxu0 0.0
      %1736 = vmatmul.mubr.f32.gmra.mrb[0].mxu0 %v1436
      %v1737 = vpop.f32.mrb[0].mxu0
      %v1738 = vadd.f32 %v1367, %v1737
      %v1739 = vpop.f32.mrb[0].mxu0
      %1740 = vmatprep.mubr.f32.mxu0 0.0
      %1741 = vmatmul.mubr.f32.gmra.mrb[0].mxu0 %v1439
      %v1742 = vpop.f32.mrb[0].mxu0
      %v1743 = vadd.f32 %v1367, %v1742
      %v1744 = vpop.f32.mrb[0].mxu0
      %1745 = vmatprep.mubr.f32.mxu0 0.0
      %1746 = vmatmul.mubr.f32.gmra.mrb[0].mxu0 %v1442
      %v1747 = vpop.f32.mrb[0].mxu0
      %v1748 = vadd.f32 %v1367, %v1747
      %v1749 = vpop.f32.mrb[0].mxu0
      %1750 = vmatprep.mubr.f32.mxu0 0.0
      %1751 = vmatmul.mubr.f32.gmra.mrb[0].mxu0 %v1445
      %v1752 = vpop.f32.mrb[0].mxu0
      %v1753 = vadd.f32 %v1367, %v1752
      %v1754 = vpop.f32.mrb[0].mxu0
      %1755 = vmatprep.mubr.f32.mxu0 0.0
      %1756 = vmatmul.mubr.f32.gmra.mrb[0].mxu0 %v1448
      %v1757 = vpop.f32.mrb[0].mxu0
      %v1758 = vadd.f32 %v1367, %v1757
      %v1759 = vpop.f32.mrb[0].mxu0
      %1760 = vmatprep.mubr.f32.mxu0 0.0
      %1761 = vmatmul.mubr.f32.gmra.mrb[0].mxu0 %v1451
      %v1762 = vpop.f32.mrb[0].mxu0
      %v1763 = vadd.f32 %v1367, %v1762
      %v1764 = vpop.f32.mrb[0].mxu0
      %1765 = vmatprep.mubr.f32.mxu0 0.0
      %1766 = vmatmul.mubr.f32.gmra.mrb[0].mxu0 %v1454
      %v1767 = vpop.f32.mrb[0].mxu0
      %v1768 = vadd.f32 %v1367, %v1767
      %v1769 = vpop.f32.mrb[0].mxu0
      %1770 = vmatprep.mubr.f32.mxu0 0.0
      %1771 = vmatmul.mubr.f32.gmra.mrb[0].mxu0 %v1457
      %v1772 = vpop.f32.mrb[0].mxu0
      %v1773 = vadd.f32 %v1367, %v1772
      %v1774 = vpop.f32.mrb[0].mxu0
      %1775 = vmatprep.mubr.f32.mxu0 0.0
      %1776 = vmatmul.mubr.f32.gmra.mrb[0].mxu0 %v1460
      %v1777 = vpop.f32.mrb[0].mxu0
      %v1778 = vadd.f32 %v1367, %v1777
      %v1779 = vpop.f32.mrb[0].mxu0
      %1780 = vmatprep.mubr.f32.mxu0 0.0
      %1781 = vmatmul.mubr.f32.gmra.mrb[0].mxu0 %v1463
      %v1782 = vpop.f32.mrb[0].mxu0
      %v1783 = vadd.f32 %v1367, %v1782
      %v1784 = vpop.f32.mrb[0].mxu0
      %1785 = vmatprep.mubr.f32.mxu0 0.0
      %1786 = vmatmul.mubr.f32.gmra.mrb[0].mxu0 %v1466
      %v1787 = vpop.f32.mrb[0].mxu0
      %v1788 = vadd.f32 %v1367, %v1787
      %v1789 = vpop.f32.mrb[0].mxu0
      %1790 = vmatprep.mubr.f32.mxu0 0.0
      %1791 = vmatmul.mubr.f32.gmra.mrb[0].mxu0 %v1469
      %v1792 = vpop.f32.mrb[0].mxu0
      %v1793 = vadd.f32 %v1367, %v1792
      %v1794 = vpop.f32.mrb[0].mxu0
      %1795 = vmatprep.mubr.f32.mxu0 0.0
      %1796 = vmatmul.mubr.f32.gmra.mrb[0].mxu0 %v1472
      %v1797 = vpop.f32.mrb[0].mxu0
      %v1798 = vadd.f32 %v1367, %v1797
      %v1799 = vpop.f32.mrb[0].mxu0
      %1800 = vmatprep.mubr.f32.mxu0 0.0
      %1801 = vmatmul.mubr.f32.gmra.mrb[0].mxu0 %v1475
      %v1802 = vpop.f32.mrb[0].mxu0
      %v1803 = vadd.f32 %v1367, %v1802
      %v1804 = vpop.f32.mrb[0].mxu0
      %1805 = vmatprep.mubr.f32.mxu0 0.0
      %1806 = vmatmul.mubr.f32.gmra.mrb[0].mxu0 %v1478
      %v1807 = vpop.f32.mrb[0].mxu0
      %v1808 = vadd.f32 %v1367, %v1807
      %v1809 = vpop.f32.mrb[0].mxu0
      %1810 = vmatprep.mubr.f32.mxu0 0.0
      %1811 = vmatmul.mubr.f32.gmra.mrb[0].mxu0 %v1481
      %v1812 = vpop.f32.mrb[0].mxu0
      %v1813 = vadd.f32 %v1367, %v1812
      %v1814 = vpop.f32.mrb[0].mxu0
      %1815 = vmatprep.mubr.f32.mxu0 0.0
      %1816 = vmatmul.mubr.f32.gmra.mrb[0].mxu0 %v1484
      %v1817 = vpop.f32.mrb[0].mxu0
      %v1818 = vadd.f32 %v1367, %v1817
      %v1819 = vpop.f32.mrb[0].mxu0
      %1820 = vmatprep.mubr.f32.mxu0 0.0
      %1821 = vmatmul.mubr.f32.gmra.mrb[0].mxu0 %v1487
      %v1822 = vpop.f32.mrb[0].mxu0
      %v1823 = vadd.f32 %v1367, %v1822
      %v1824 = vpop.f32.mrb[0].mxu0
      %1825 = vmatprep.mubr.f32.mxu0 0.0
      %1826 = vmatmul.mubr.f32.gmra.mrb[0].mxu0 %v1490
      %v1827 = vpop.f32.mrb[0].mxu0
      %v1828 = vadd.f32 %v1367, %v1827
      %v1829 = vpop.f32.mrb[0].mxu0
      %1830 = vmatprep.mubr.f32.mxu0 0.0
      %1831 = vmatmul.mubr.f32.gmra.mrb[0].mxu0 %v1493
      %v1832 = vpop.f32.mrb[0].mxu0
      %v1833 = vadd.f32 %v1367, %v1832
      %v1834 = vpop.f32.mrb[0].mxu0
      %1835 = vmatprep.mubr.f32.mxu0 0.0
      %1836 = vmatmul.mubr.f32.gmra.mrb[0].mxu0 %v1496
      %v1837 = vpop.f32.mrb[0].mxu0
      %v1838 = vadd.f32 %v1367, %v1837
      %v1839 = vpop.f32.mrb[0].mxu0
      %1840 = vmatprep.mubr.f32.mxu0 0.0
      %1841 = vmatmul.mubr.f32.gmra.mrb[0].mxu0 %v1499
      %v1842 = vpop.f32.mrb[0].mxu0
      %v1843 = vadd.f32 %v1367, %v1842
      %v1844 = vpop.f32.mrb[0].mxu0
      %1845 = vmatprep.mubr.f32.mxu0 0.0
      %1846 = vmatmul.mubr.f32.gmra.mrb[0].mxu0 %v1502
      %v1847 = vpop.f32.mrb[0].mxu0
      %v1848 = vadd.f32 %v1367, %v1847
      %v1849 = vpop.f32.mrb[0].mxu0
      %1850 = vmatprep.mubr.f32.mxu0 0.0
      %1851 = vmatmul.mubr.f32.gmra.mrb[0].mxu0 %v1505
      %v1852 = vpop.f32.mrb[0].mxu0
      %v1853 = vadd.f32 %v1367, %v1852
      %v1854 = vpop.f32.mrb[0].mxu0
      %1855 = vmatprep.mubr.f32.mxu0 0.0
      %1856 = vmatmul.mubr.f32.gmra.mrb[0].mxu0 %v1508
      %v1857 = vpop.f32.mrb[0].mxu0
      %v1858 = vadd.f32 %v1367, %v1857
      %v1859 = vpop.f32.mrb[0].mxu0
      %1860 = vmatprep.mubr.f32.mxu0 0.0
      %1861 = vmatmul.mubr.f32.gmra.mrb[0].mxu0 %v1511
      %v1862 = vpop.f32.mrb[0].mxu0
      %v1863 = vadd.f32 %v1367, %v1862
      %v1864 = vpop.f32.mrb[0].mxu0
      %1865 = vmatprep.mubr.f32.mxu0 0.0
      %1866 = vmatmul.mubr.f32.gmra.mrb[0].mxu0 %v1514
      %v1867 = vpop.f32.mrb[0].mxu0
      %v1868 = vadd.f32 %v1367, %v1867
      %v1869 = vpop.f32.mrb[0].mxu0
      %1870 = vmatprep.mubr.f32.mxu0 0.0
      %1871 = vmatmul.mubr.f32.gmra.mrb[0].mxu0 %v1517
      %v1872 = vpop.f32.mrb[0].mxu0
      %v1873 = vadd.f32 %v1367, %v1872
      %v1874 = vpop.f32.mrb[0].mxu0
      %1875 = vmatprep.mubr.f32.mxu0 0.0
      %1876 = vmatmul.mubr.f32.gmra.mrb[0].mxu0 %v1520
      %v1877 = vpop.f32.mrb[0].mxu0
      %v1878 = vadd.f32 %v1367, %v1877
      %v1879 = vpop.f32.mrb[0].mxu0
      %1880 = vmatprep.mubr.f32.mxu0 0.0
      %1881 = vmatmul.mubr.f32.gmra.mrb[0].mxu0 %v1523
      %v1882 = vpop.f32.mrb[0].mxu0
      %v1883 = vadd.f32 %v1367, %v1882
      %v1884 = vpop.f32.mrb[0].mxu0
      %1885 = vmatprep.mubr.f32.mxu0 0.0
      %1886 = vmatmul.mubr.f32.gmra.mrb[0].mxu0 %v1526
      %v1887 = vpop.f32.mrb[0].mxu0
      %v1888 = vadd.f32 %v1367, %v1887
      %v1889 = vpop.f32.mrb[0].mxu0
      %1890 = vmatprep.mubr.f32.mxu0 0.0
      %1891 = vmatmul.mubr.f32.gmra.mrb[0].mxu0 %v1529
      %v1892 = vpop.f32.mrb[0].mxu0
      %v1893 = vadd.f32 %v1367, %v1892
      %v1894 = vpop.f32.mrb[0].mxu0
      %1895 = vmatprep.mubr.f32.mxu0 0.0
      %1896 = vmatmul.mubr.f32.gmra.mrb[0].mxu0 %v1532
      %v1897 = vpop.f32.mrb[0].mxu0
      %v1898 = vadd.f32 %v1367, %v1897
      %v1899 = vpop.f32.mrb[0].mxu0
      %1900 = vmatprep.mubr.f32.mxu0 0.0
      %1901 = vmatmul.mubr.f32.gmra.mrb[0].mxu0 %v1535
      %v1902 = vpop.f32.mrb[0].mxu0
      %v1903 = vadd.f32 %v1367, %v1902
      %v1904 = vpop.f32.mrb[0].mxu0
      %1905 = vmatprep.mubr.f32.mxu0 0.0
      %1906 = vmatmul.mubr.f32.gmra.mrb[0].mxu0 %v1538
      %v1907 = vpop.f32.mrb[0].mxu0
      %v1908 = vadd.f32 %v1367, %v1907
      %v1909 = vpop.f32.mrb[0].mxu0
      %1910 = vmatprep.mubr.f32.mxu0 0.0
      %1911 = vmatmul.mubr.f32.gmra.mrb[0].mxu0 %v1541
      %v1912 = vpop.f32.mrb[0].mxu0
      %v1913 = vadd.f32 %v1367, %v1912
      %v1914 = vpop.f32.mrb[0].mxu0
      %1915 = vmatprep.mubr.f32.mxu0 0.0
      %1916 = vmatmul.mubr.f32.gmra.mrb[0].mxu0 %v1544
      %v1917 = vpop.f32.mrb[0].mxu0
      %v1918 = vadd.f32 %v1367, %v1917
      %v1919 = vpop.f32.mrb[0].mxu0
      %1920 = vmatprep.mubr.f32.mxu0 0.0
      %1921 = vmatmul.mubr.f32.gmra.mrb[0].mxu0 %v1547
      %v1922 = vpop.f32.mrb[0].mxu0
      %v1923 = vadd.f32 %v1367, %v1922
      %v1924 = vpop.f32.mrb[0].mxu0
      %1925 = vmatprep.mubr.f32.mxu0 0.0
      %1926 = vmatmul.mubr.f32.gmra.mrb[0].mxu0 %v1550
      %v1927 = vpop.f32.mrb[0].mxu0
      %v1928 = vadd.f32 %v1367, %v1927
      %v1929 = vpop.f32.mrb[0].mxu0
      %1930 = vmatprep.mubr.f32.mxu0 0.0
      %1931 = vmatmul.mubr.f32.gmra.mrb[0].mxu0 %v1553
      %v1932 = vpop.f32.mrb[0].mxu0
      %v1933 = vadd.f32 %v1367, %v1932
      %v1934 = vpop.f32.mrb[0].mxu0
      %1935 = vmatprep.mubr.f32.mxu0 0.0
      %1936 = vmatmul.mubr.f32.gmra.mrb[0].mxu0 %v1556
      %v1937 = vpop.f32.mrb[0].mxu0
      %v1938 = vadd.f32 %v1367, %v1937
      %v1939 = vpop.f32.mrb[0].mxu0
      %1940 = vmatprep.mubr.f32.mxu0 0.0
      %1941 = vmatmul.mubr.f32.gmra.mrb[0].mxu0 %v1559
      %v1942 = vpop.f32.mrb[0].mxu0
      %v1943 = vadd.f32 %v1367, %v1942
      %v1944 = vpop.f32.mrb[0].mxu0
      %1945 = vdwg.mxu0
      %v1946 = vld [vmem:[%s304] sm:$0xff]
      %v1947 = vld [vmem:[%s304 + $0x8] sm:$0xff]
      %v1948 = vld [vmem:[%s304 + $0x10] sm:$0xff]
      %v1949 = vld [vmem:[%s304 + $0x18] sm:$0xff]
      %v1950 = vld [vmem:[%s304 + $0x20] sm:$0xff]
      %v1951 = vld [vmem:[%s304 + $0x28] sm:$0xff]
      %v1952 = vld [vmem:[%s304 + $0x30] sm:$0xff]
      %v1953 = vld [vmem:[%s304 + $0x38] sm:$0xff]
      %v1954 = vld [vmem:[%s304 + $0x40] sm:$0xff]
      %v1955 = vld [vmem:[%s304 + $0x48] sm:$0xff]
      %v1956 = vld [vmem:[%s304 + $0x50] sm:$0xff]
      %v1957 = vld [vmem:[%s304 + $0x58] sm:$0xff]
      %v1958 = vld [vmem:[%s304 + $0x60] sm:$0xff]
      %v1959 = vld [vmem:[%s304 + $0x68] sm:$0xff]
      %v1960 = vld [vmem:[%s304 + $0x70] sm:$0xff]
      %v1961 = vld [vmem:[%s304 + $0x78] sm:$0xff]
      %v1962 = vld [vmem:[%s304 + $0x80] sm:$0xff]
      %v1963 = vld [vmem:[%s304 + $0x88] sm:$0xff]
      %v1964 = vld [vmem:[%s304 + $0x90] sm:$0xff]
      %v1965 = vld [vmem:[%s304 + $0x98] sm:$0xff]
      %v1966 = vld [vmem:[%s304 + $0xa0] sm:$0xff]
      %v1967 = vld [vmem:[%s304 + $0xa8] sm:$0xff]
      %v1968 = vld [vmem:[%s304 + $0xb0] sm:$0xff]
      %v1969 = vld [vmem:[%s304 + $0xb8] sm:$0xff]
      %v1970 = vld [vmem:[%s304 + $0xc0] sm:$0xff]
      %v1971 = vld [vmem:[%s304 + $0xc8] sm:$0xff]
      %v1972 = vld [vmem:[%s304 + $0xd0] sm:$0xff]
      %v1973 = vld [vmem:[%s304 + $0xd8] sm:$0xff]
      %v1974 = vld [vmem:[%s304 + $0xe0] sm:$0xff]
      %v1975 = vld [vmem:[%s304 + $0xe8] sm:$0xff]
      %v1976 = vld [vmem:[%s304 + $0xf0] sm:$0xff]
      %v1977 = vld [vmem:[%s304 + $0xf8] sm:$0xff]
      %v1978 = vld [vmem:[%s304 + $0x100] sm:$0xff]
      %v1979 = vld [vmem:[%s304 + $0x108] sm:$0xff]
      %v1980 = vld [vmem:[%s304 + $0x110] sm:$0xff]
      %v1981 = vld [vmem:[%s304 + $0x118] sm:$0xff]
      %v1982 = vld [vmem:[%s304 + $0x120] sm:$0xff]
      %v1983 = vld [vmem:[%s304 + $0x128] sm:$0xff]
      %v1984 = vld [vmem:[%s304 + $0x130] sm:$0xff]
      %v1985 = vld [vmem:[%s304 + $0x138] sm:$0xff]
      %v1986 = vld [vmem:[%s304 + $0x140] sm:$0xff]
      %v1987 = vld [vmem:[%s304 + $0x148] sm:$0xff]
      %v1988 = vld [vmem:[%s304 + $0x150] sm:$0xff]
      %v1989 = vld [vmem:[%s304 + $0x158] sm:$0xff]
      %v1990 = vld [vmem:[%s304 + $0x160] sm:$0xff]
      %v1991 = vld [vmem:[%s304 + $0x168] sm:$0xff]
      %v1992 = vld [vmem:[%s304 + $0x170] sm:$0xff]
      %v1993 = vld [vmem:[%s304 + $0x178] sm:$0xff]
      %v1994 = vld [vmem:[%s304 + $0x180] sm:$0xff]
      %v1995 = vld [vmem:[%s304 + $0x188] sm:$0xff]
      %v1996 = vld [vmem:[%s304 + $0x190] sm:$0xff]
      %v1997 = vld [vmem:[%s304 + $0x198] sm:$0xff]
      %v1998 = vld [vmem:[%s304 + $0x1a0] sm:$0xff]
      %v1999 = vld [vmem:[%s304 + $0x1a8] sm:$0xff]
      %v2000 = vld [vmem:[%s304 + $0x1b0] sm:$0xff]
      %v2001 = vld [vmem:[%s304 + $0x1b8] sm:$0xff]
      %v2002 = vld [vmem:[%s304 + $0x1c0] sm:$0xff]
      %v2003 = vld [vmem:[%s304 + $0x1c8] sm:$0xff]
      %v2004 = vld [vmem:[%s304 + $0x1d0] sm:$0xff]
      %v2005 = vld [vmem:[%s304 + $0x1d8] sm:$0xff]
      %v2006 = vld [vmem:[%s304 + $0x1e0] sm:$0xff]
      %v2007 = vld [vmem:[%s304 + $0x1e8] sm:$0xff]
      %v2008 = vld [vmem:[%s304 + $0x1f0] sm:$0xff]
      %v2009 = vld [vmem:[%s304 + $0x1f8] sm:$0xff]
      %2011 = vset.pattern.permute.xlu0 0
      %2012 = vperm.xlu0 %2011, %v1946
      %v2013 = vpop.permute.xlu0 %2012
      %2016 = vset.pattern.permute.xlu0 0
      %2017 = vperm.xlu0 %2016, %v1947
      %v2018 = vpop.permute.xlu0 %2017
      %2021 = vset.pattern.permute.xlu0 0
      %2022 = vperm.xlu0 %2021, %v1948
      %v2023 = vpop.permute.xlu0 %2022
      %2026 = vset.pattern.permute.xlu0 0
      %2027 = vperm.xlu0 %2026, %v1949
      %v2028 = vpop.permute.xlu0 %2027
      %2031 = vset.pattern.permute.xlu0 0
      %2032 = vperm.xlu0 %2031, %v1950
      %v2033 = vpop.permute.xlu0 %2032
      %2036 = vset.pattern.permute.xlu0 0
      %2037 = vperm.xlu0 %2036, %v1951
      %v2038 = vpop.permute.xlu0 %2037
      %2041 = vset.pattern.permute.xlu0 0
      %2042 = vperm.xlu0 %2041, %v1952
      %v2043 = vpop.permute.xlu0 %2042
      %2046 = vset.pattern.permute.xlu0 0
      %2047 = vperm.xlu0 %2046, %v1953
      %v2048 = vpop.permute.xlu0 %2047
      %2051 = vset.pattern.permute.xlu0 0
      %2052 = vperm.xlu0 %2051, %v1954
      %v2053 = vpop.permute.xlu0 %2052
      %2056 = vset.pattern.permute.xlu0 0
      %2057 = vperm.xlu0 %2056, %v1955
      %v2058 = vpop.permute.xlu0 %2057
      %2061 = vset.pattern.permute.xlu0 0
      %2062 = vperm.xlu0 %2061, %v1956
      %v2063 = vpop.permute.xlu0 %2062
      %2066 = vset.pattern.permute.xlu0 0
      %2067 = vperm.xlu0 %2066, %v1957
      %v2068 = vpop.permute.xlu0 %2067
      %2071 = vset.pattern.permute.xlu0 0
      %2072 = vperm.xlu0 %2071, %v1958
      %v2073 = vpop.permute.xlu0 %2072
      %2076 = vset.pattern.permute.xlu0 0
      %2077 = vperm.xlu0 %2076, %v1959
      %v2078 = vpop.permute.xlu0 %2077
      %2081 = vset.pattern.permute.xlu0 0
      %2082 = vperm.xlu0 %2081, %v1960
      %v2083 = vpop.permute.xlu0 %2082
      %2086 = vset.pattern.permute.xlu0 0
      %2087 = vperm.xlu0 %2086, %v1961
      %v2088 = vpop.permute.xlu0 %2087
      %2091 = vset.pattern.permute.xlu0 0
      %2092 = vperm.xlu0 %2091, %v1962
      %v2093 = vpop.permute.xlu0 %2092
      %2096 = vset.pattern.permute.xlu0 0
      %2097 = vperm.xlu0 %2096, %v1963
      %v2098 = vpop.permute.xlu0 %2097
      %2101 = vset.pattern.permute.xlu0 0
      %2102 = vperm.xlu0 %2101, %v1964
      %v2103 = vpop.permute.xlu0 %2102
      %2106 = vset.pattern.permute.xlu0 0
      %2107 = vperm.xlu0 %2106, %v1965
      %v2108 = vpop.permute.xlu0 %2107
      %2111 = vset.pattern.permute.xlu0 0
      %2112 = vperm.xlu0 %2111, %v1966
      %v2113 = vpop.permute.xlu0 %2112
      %2116 = vset.pattern.permute.xlu0 0
      %2117 = vperm.xlu0 %2116, %v1967
      %v2118 = vpop.permute.xlu0 %2117
      %2121 = vset.pattern.permute.xlu0 0
      %2122 = vperm.xlu0 %2121, %v1968
      %v2123 = vpop.permute.xlu0 %2122
      %2126 = vset.pattern.permute.xlu0 0
      %2127 = vperm.xlu0 %2126, %v1969
      %v2128 = vpop.permute.xlu0 %2127
      %2131 = vset.pattern.permute.xlu0 0
      %2132 = vperm.xlu0 %2131, %v1970
      %v2133 = vpop.permute.xlu0 %2132
      %2136 = vset.pattern.permute.xlu0 0
      %2137 = vperm.xlu0 %2136, %v1971
      %v2138 = vpop.permute.xlu0 %2137
      %2141 = vset.pattern.permute.xlu0 0
      %2142 = vperm.xlu0 %2141, %v1972
      %v2143 = vpop.permute.xlu0 %2142
      %2146 = vset.pattern.permute.xlu0 0
      %2147 = vperm.xlu0 %2146, %v1973
      %v2148 = vpop.permute.xlu0 %2147
      %2151 = vset.pattern.permute.xlu0 0
      %2152 = vperm.xlu0 %2151, %v1974
      %v2153 = vpop.permute.xlu0 %2152
      %2156 = vset.pattern.permute.xlu0 0
      %2157 = vperm.xlu0 %2156, %v1975
      %v2158 = vpop.permute.xlu0 %2157
      %2161 = vset.pattern.permute.xlu0 0
      %2162 = vperm.xlu0 %2161, %v1976
      %v2163 = vpop.permute.xlu0 %2162
      %2166 = vset.pattern.permute.xlu0 0
      %2167 = vperm.xlu0 %2166, %v1977
      %v2168 = vpop.permute.xlu0 %2167
      %2171 = vset.pattern.permute.xlu0 0
      %2172 = vperm.xlu0 %2171, %v1978
      %v2173 = vpop.permute.xlu0 %2172
      %2176 = vset.pattern.permute.xlu0 0
      %2177 = vperm.xlu0 %2176, %v1979
      %v2178 = vpop.permute.xlu0 %2177
      %2181 = vset.pattern.permute.xlu0 0
      %2182 = vperm.xlu0 %2181, %v1980
      %v2183 = vpop.permute.xlu0 %2182
      %2186 = vset.pattern.permute.xlu0 0
      %2187 = vperm.xlu0 %2186, %v1981
      %v2188 = vpop.permute.xlu0 %2187
      %2191 = vset.pattern.permute.xlu0 0
      %2192 = vperm.xlu0 %2191, %v1982
      %v2193 = vpop.permute.xlu0 %2192
      %2196 = vset.pattern.permute.xlu0 0
      %2197 = vperm.xlu0 %2196, %v1983
      %v2198 = vpop.permute.xlu0 %2197
      %2201 = vset.pattern.permute.xlu0 0
      %2202 = vperm.xlu0 %2201, %v1984
      %v2203 = vpop.permute.xlu0 %2202
      %2206 = vset.pattern.permute.xlu0 0
      %2207 = vperm.xlu0 %2206, %v1985
      %v2208 = vpop.permute.xlu0 %2207
      %2211 = vset.pattern.permute.xlu0 0
      %2212 = vperm.xlu0 %2211, %v1986
      %v2213 = vpop.permute.xlu0 %2212
      %2216 = vset.pattern.permute.xlu0 0
      %2217 = vperm.xlu0 %2216, %v1987
      %v2218 = vpop.permute.xlu0 %2217
      %2221 = vset.pattern.permute.xlu0 0
      %2222 = vperm.xlu0 %2221, %v1988
      %v2223 = vpop.permute.xlu0 %2222
      %2226 = vset.pattern.permute.xlu0 0
      %2227 = vperm.xlu0 %2226, %v1989
      %v2228 = vpop.permute.xlu0 %2227
      %2231 = vset.pattern.permute.xlu0 0
      %2232 = vperm.xlu0 %2231, %v1990
      %v2233 = vpop.permute.xlu0 %2232
      %2236 = vset.pattern.permute.xlu0 0
      %2237 = vperm.xlu0 %2236, %v1991
      %v2238 = vpop.permute.xlu0 %2237
      %2241 = vset.pattern.permute.xlu0 0
      %2242 = vperm.xlu0 %2241, %v1992
      %v2243 = vpop.permute.xlu0 %2242
      %2246 = vset.pattern.permute.xlu0 0
      %2247 = vperm.xlu0 %2246, %v1993
      %v2248 = vpop.permute.xlu0 %2247
      %2251 = vset.pattern.permute.xlu0 0
      %2252 = vperm.xlu0 %2251, %v1994
      %v2253 = vpop.permute.xlu0 %2252
      %2256 = vset.pattern.permute.xlu0 0
      %2257 = vperm.xlu0 %2256, %v1995
      %v2258 = vpop.permute.xlu0 %2257
      %2261 = vset.pattern.permute.xlu0 0
      %2262 = vperm.xlu0 %2261, %v1996
      %v2263 = vpop.permute.xlu0 %2262
      %2266 = vset.pattern.permute.xlu0 0
      %2267 = vperm.xlu0 %2266, %v1997
      %v2268 = vpop.permute.xlu0 %2267
      %2271 = vset.pattern.permute.xlu0 0
      %2272 = vperm.xlu0 %2271, %v1998
      %v2273 = vpop.permute.xlu0 %2272
      %2276 = vset.pattern.permute.xlu0 0
      %2277 = vperm.xlu0 %2276, %v1999
      %v2278 = vpop.permute.xlu0 %2277
      %2281 = vset.pattern.permute.xlu0 0
      %2282 = vperm.xlu0 %2281, %v2000
      %v2283 = vpop.permute.xlu0 %2282
      %2286 = vset.pattern.permute.xlu0 0
      %2287 = vperm.xlu0 %2286, %v2001
      %v2288 = vpop.permute.xlu0 %2287
      %2291 = vset.pattern.permute.xlu0 0
      %2292 = vperm.xlu0 %2291, %v2002
      %v2293 = vpop.permute.xlu0 %2292
      %2296 = vset.pattern.permute.xlu0 0
      %2297 = vperm.xlu0 %2296, %v2003
      %v2298 = vpop.permute.xlu0 %2297
      %2301 = vset.pattern.permute.xlu0 0
      %2302 = vperm.xlu0 %2301, %v2004
      %v2303 = vpop.permute.xlu0 %2302
      %2306 = vset.pattern.permute.xlu0 0
      %2307 = vperm.xlu0 %2306, %v2005
      %v2308 = vpop.permute.xlu0 %2307
      %2311 = vset.pattern.permute.xlu0 0
      %2312 = vperm.xlu0 %2311, %v2006
      %v2313 = vpop.permute.xlu0 %2312
      %2316 = vset.pattern.permute.xlu0 0
      %2317 = vperm.xlu0 %2316, %v2007
      %v2318 = vpop.permute.xlu0 %2317
      %2321 = vset.pattern.permute.xlu0 0
      %2322 = vperm.xlu0 %2321, %v2008
      %v2323 = vpop.permute.xlu0 %2322
      %2326 = vset.pattern.permute.xlu0 0
      %2327 = vperm.xlu0 %2326, %v2009
      %v2328 = vpop.permute.xlu0 %2327
      %v2330 = vmul.f32 %v1628, %v2013
      %v2331 = vmul.f32 %v1633, %v2018
      %v2332 = vmul.f32 %v1638, %v2023
      %v2333 = vmul.f32 %v1643, %v2028
      %v2334 = vmul.f32 %v1648, %v2033
      %v2335 = vmul.f32 %v1653, %v2038
      %v2336 = vmul.f32 %v1658, %v2043
      %v2337 = vmul.f32 %v1663, %v2048
      %v2338 = vmul.f32 %v1668, %v2053
      %v2339 = vmul.f32 %v1673, %v2058
      %v2340 = vmul.f32 %v1678, %v2063
      %v2341 = vmul.f32 %v1683, %v2068
      %v2342 = vmul.f32 %v1688, %v2073
      %v2343 = vmul.f32 %v1693, %v2078
      %v2344 = vmul.f32 %v1698, %v2083
      %v2345 = vmul.f32 %v1703, %v2088
      %v2346 = vmul.f32 %v1708, %v2093
      %v2347 = vmul.f32 %v1713, %v2098
      %v2348 = vmul.f32 %v1718, %v2103
      %v2349 = vmul.f32 %v1723, %v2108
      %v2350 = vmul.f32 %v1728, %v2113
      %v2351 = vmul.f32 %v1733, %v2118
      %v2352 = vmul.f32 %v1738, %v2123
      %v2353 = vmul.f32 %v1743, %v2128
      %v2354 = vmul.f32 %v1748, %v2133
      %v2355 = vmul.f32 %v1753, %v2138
      %v2356 = vmul.f32 %v1758, %v2143
      %v2357 = vmul.f32 %v1763, %v2148
      %v2358 = vmul.f32 %v1768, %v2153
      %v2359 = vmul.f32 %v1773, %v2158
      %v2360 = vmul.f32 %v1778, %v2163
      %v2361 = vmul.f32 %v1783, %v2168
      %v2362 = vmul.f32 %v1788, %v2173
      %v2363 = vmul.f32 %v1793, %v2178
      %v2364 = vmul.f32 %v1798, %v2183
      %v2365 = vmul.f32 %v1803, %v2188
      %v2366 = vmul.f32 %v1808, %v2193
      %v2367 = vmul.f32 %v1813, %v2198
      %v2368 = vmul.f32 %v1818, %v2203
      %v2369 = vmul.f32 %v1823, %v2208
      %v2370 = vmul.f32 %v1828, %v2213
      %v2371 = vmul.f32 %v1833, %v2218
      %v2372 = vmul.f32 %v1838, %v2223
      %v2373 = vmul.f32 %v1843, %v2228
      %v2374 = vmul.f32 %v1848, %v2233
      %v2375 = vmul.f32 %v1853, %v2238
      %v2376 = vmul.f32 %v1858, %v2243
      %v2377 = vmul.f32 %v1863, %v2248
      %v2378 = vmul.f32 %v1868, %v2253
      %v2379 = vmul.f32 %v1873, %v2258
      %v2380 = vmul.f32 %v1878, %v2263
      %v2381 = vmul.f32 %v1883, %v2268
      %v2382 = vmul.f32 %v1888, %v2273
      %v2383 = vmul.f32 %v1893, %v2278
      %v2384 = vmul.f32 %v1898, %v2283
      %v2385 = vmul.f32 %v1903, %v2288
      %v2386 = vmul.f32 %v1908, %v2293
      %v2387 = vmul.f32 %v1913, %v2298
      %v2388 = vmul.f32 %v1918, %v2303
      %v2389 = vmul.f32 %v1923, %v2308
      %v2390 = vmul.f32 %v1928, %v2313
      %v2391 = vmul.f32 %v1933, %v2318
      %v2392 = vmul.f32 %v1938, %v2323
      %v2393 = vmul.f32 %v1943, %v2328
      %v2394 = vpack.c.bf16 %v2331, %v2330
      %v2395 = vpack.c.bf16 %v2333, %v2332
      %v2396 = vpack.c.bf16 %v2335, %v2334
      %v2397 = vpack.c.bf16 %v2337, %v2336
      %v2398 = vpack.c.bf16 %v2339, %v2338
      %v2399 = vpack.c.bf16 %v2341, %v2340
      %v2400 = vpack.c.bf16 %v2343, %v2342
      %v2401 = vpack.c.bf16 %v2345, %v2344
      %v2402 = vpack.c.bf16 %v2347, %v2346
      %v2403 = vpack.c.bf16 %v2349, %v2348
      %v2404 = vpack.c.bf16 %v2351, %v2350
      %v2405 = vpack.c.bf16 %v2353, %v2352
      %v2406 = vpack.c.bf16 %v2355, %v2354
      %v2407 = vpack.c.bf16 %v2357, %v2356
      %v2408 = vpack.c.bf16 %v2359, %v2358
      %v2409 = vpack.c.bf16 %v2361, %v2360
      %v2410 = vpack.c.bf16 %v2363, %v2362
      %v2411 = vpack.c.bf16 %v2365, %v2364
      %v2412 = vpack.c.bf16 %v2367, %v2366
      %v2413 = vpack.c.bf16 %v2369, %v2368
      %v2414 = vpack.c.bf16 %v2371, %v2370
      %v2415 = vpack.c.bf16 %v2373, %v2372
      %v2416 = vpack.c.bf16 %v2375, %v2374
      %v2417 = vpack.c.bf16 %v2377, %v2376
      %v2418 = vpack.c.bf16 %v2379, %v2378
      %v2419 = vpack.c.bf16 %v2381, %v2380
      %v2420 = vpack.c.bf16 %v2383, %v2382
      %v2421 = vpack.c.bf16 %v2385, %v2384
      %v2422 = vpack.c.bf16 %v2387, %v2386
      %v2423 = vpack.c.bf16 %v2389, %v2388
      %v2424 = vpack.c.bf16 %v2391, %v2390
      %v2425 = vpack.c.bf16 %v2393, %v2392
      %v2458 = vunpack.c.l.b16 %v2394
      %v2459 = vunpack.c.h.b16 %v2394
      %v2460 = vunpack.c.l.b16 %v2395
      %v2461 = vunpack.c.h.b16 %v2395
      %v2462 = vunpack.c.l.b16 %v2396
      %v2463 = vunpack.c.h.b16 %v2396
      %v2464 = vunpack.c.l.b16 %v2397
      %v2465 = vunpack.c.h.b16 %v2397
      %v2466 = vunpack.c.l.b16 %v2398
      %v2467 = vunpack.c.h.b16 %v2398
      %v2468 = vunpack.c.l.b16 %v2399
      %v2469 = vunpack.c.h.b16 %v2399
      %v2470 = vunpack.c.l.b16 %v2400
      %v2471 = vunpack.c.h.b16 %v2400
      %v2472 = vunpack.c.l.b16 %v2401
      %v2473 = vunpack.c.h.b16 %v2401
      %v2474 = vunpack.c.l.b16 %v2402
      %v2475 = vunpack.c.h.b16 %v2402
      %v2476 = vunpack.c.l.b16 %v2403
      %v2477 = vunpack.c.h.b16 %v2403
      %v2478 = vunpack.c.l.b16 %v2404
      %v2479 = vunpack.c.h.b16 %v2404
      %v2480 = vunpack.c.l.b16 %v2405
      %v2481 = vunpack.c.h.b16 %v2405
      %v2482 = vunpack.c.l.b16 %v2406
      %v2483 = vunpack.c.h.b16 %v2406
      %v2484 = vunpack.c.l.b16 %v2407
      %v2485 = vunpack.c.h.b16 %v2407
      %v2486 = vunpack.c.l.b16 %v2408
      %v2487 = vunpack.c.h.b16 %v2408
      %v2488 = vunpack.c.l.b16 %v2409
      %v2489 = vunpack.c.h.b16 %v2409
      %v2490 = vunpack.c.l.b16 %v2410
      %v2491 = vunpack.c.h.b16 %v2410
      %v2492 = vunpack.c.l.b16 %v2411
      %v2493 = vunpack.c.h.b16 %v2411
      %v2494 = vunpack.c.l.b16 %v2412
      %v2495 = vunpack.c.h.b16 %v2412
      %v2496 = vunpack.c.l.b16 %v2413
      %v2497 = vunpack.c.h.b16 %v2413
      %v2498 = vunpack.c.l.b16 %v2414
      %v2499 = vunpack.c.h.b16 %v2414
      %v2500 = vunpack.c.l.b16 %v2415
      %v2501 = vunpack.c.h.b16 %v2415
      %v2502 = vunpack.c.l.b16 %v2416
      %v2503 = vunpack.c.h.b16 %v2416
      %v2504 = vunpack.c.l.b16 %v2417
      %v2505 = vunpack.c.h.b16 %v2417
      %v2506 = vunpack.c.l.b16 %v2418
      %v2507 = vunpack.c.h.b16 %v2418
      %v2508 = vunpack.c.l.b16 %v2419
      %v2509 = vunpack.c.h.b16 %v2419
      %v2510 = vunpack.c.l.b16 %v2420
      %v2511 = vunpack.c.h.b16 %v2420
      %v2512 = vunpack.c.l.b16 %v2421
      %v2513 = vunpack.c.h.b16 %v2421
      %v2514 = vunpack.c.l.b16 %v2422
      %v2515 = vunpack.c.h.b16 %v2422
      %v2516 = vunpack.c.l.b16 %v2423
      %v2517 = vunpack.c.h.b16 %v2423
      %v2518 = vunpack.c.l.b16 %v2424
      %v2519 = vunpack.c.h.b16 %v2424
      %v2520 = vunpack.c.l.b16 %v2425
      %v2521 = vunpack.c.h.b16 %v2425
      %v2522 = vpack.c.b16 %v2458, %v2458
      %v2523 = vpack.c.b16 %v2459, %v2459
      %v2524 = vpack.c.b16 %v2460, %v2460
      %v2525 = vpack.c.b16 %v2461, %v2461
      %v2526 = vpack.c.b16 %v2462, %v2462
      %v2527 = vpack.c.b16 %v2463, %v2463
      %v2528 = vpack.c.b16 %v2464, %v2464
      %v2529 = vpack.c.b16 %v2465, %v2465
      %v2530 = vpack.c.b16 %v2466, %v2466
      %v2531 = vpack.c.b16 %v2467, %v2467
      %v2532 = vpack.c.b16 %v2468, %v2468
      %v2533 = vpack.c.b16 %v2469, %v2469
      %v2534 = vpack.c.b16 %v2470, %v2470
      %v2535 = vpack.c.b16 %v2471, %v2471
      %v2536 = vpack.c.b16 %v2472, %v2472
      %v2537 = vpack.c.b16 %v2473, %v2473
      %v2538 = vpack.c.b16 %v2474, %v2474
      %v2539 = vpack.c.b16 %v2475, %v2475
      %v2540 = vpack.c.b16 %v2476, %v2476
      %v2541 = vpack.c.b16 %v2477, %v2477
      %v2542 = vpack.c.b16 %v2478, %v2478
      %v2543 = vpack.c.b16 %v2479, %v2479
      %v2544 = vpack.c.b16 %v2480, %v2480
      %v2545 = vpack.c.b16 %v2481, %v2481
      %v2546 = vpack.c.b16 %v2482, %v2482
      %v2547 = vpack.c.b16 %v2483, %v2483
      %v2548 = vpack.c.b16 %v2484, %v2484
      %v2549 = vpack.c.b16 %v2485, %v2485
      %v2550 = vpack.c.b16 %v2486, %v2486
      %v2551 = vpack.c.b16 %v2487, %v2487
      %v2552 = vpack.c.b16 %v2488, %v2488
      %v2553 = vpack.c.b16 %v2489, %v2489
      %v2554 = vpack.c.b16 %v2490, %v2490
      %v2555 = vpack.c.b16 %v2491, %v2491
      %v2556 = vpack.c.b16 %v2492, %v2492
      %v2557 = vpack.c.b16 %v2493, %v2493
      %v2558 = vpack.c.b16 %v2494, %v2494
      %v2559 = vpack.c.b16 %v2495, %v2495
      %v2560 = vpack.c.b16 %v2496, %v2496
      %v2561 = vpack.c.b16 %v2497, %v2497
      %v2562 = vpack.c.b16 %v2498, %v2498
      %v2563 = vpack.c.b16 %v2499, %v2499
      %v2564 = vpack.c.b16 %v2500, %v2500
      %v2565 = vpack.c.b16 %v2501, %v2501
      %v2566 = vpack.c.b16 %v2502, %v2502
      %v2567 = vpack.c.b16 %v2503, %v2503
      %v2568 = vpack.c.b16 %v2504, %v2504
      %v2569 = vpack.c.b16 %v2505, %v2505
      %v2570 = vpack.c.b16 %v2506, %v2506
      %v2571 = vpack.c.b16 %v2507, %v2507
      %v2572 = vpack.c.b16 %v2508, %v2508
      %v2573 = vpack.c.b16 %v2509, %v2509
      %v2574 = vpack.c.b16 %v2510, %v2510
      %v2575 = vpack.c.b16 %v2511, %v2511
      %v2576 = vpack.c.b16 %v2512, %v2512
      %v2577 = vpack.c.b16 %v2513, %v2513
      %v2578 = vpack.c.b16 %v2514, %v2514
      %v2579 = vpack.c.b16 %v2515, %v2515
      %v2580 = vpack.c.b16 %v2516, %v2516
      %v2581 = vpack.c.b16 %v2517, %v2517
      %v2582 = vpack.c.b16 %v2518, %v2518
      %v2583 = vpack.c.b16 %v2519, %v2519
      %v2584 = vpack.c.b16 %v2520, %v2520
      %v2585 = vpack.c.b16 %v2521, %v2521
      %vm2650 = vcmask 60416
      %2651 = vst.msk [vmem:[%s310] sm:$0xf] %vm2650, %v2522
      %2652 = vst.msk [vmem:[%s310 + $0x4] sm:$0xf] %vm2650, %v2523
      %2653 = vst.msk [vmem:[%s310 + $0x8] sm:$0xf] %vm2650, %v2524
      %2654 = vst.msk [vmem:[%s310 + $0xc] sm:$0xf] %vm2650, %v2525
      %2655 = vst.msk [vmem:[%s310 + $0x10] sm:$0xf] %vm2650, %v2526
      %2656 = vst.msk [vmem:[%s310 + $0x14] sm:$0xf] %vm2650, %v2527
      %2657 = vst.msk [vmem:[%s310 + $0x18] sm:$0xf] %vm2650, %v2528
      %2658 = vst.msk [vmem:[%s310 + $0x1c] sm:$0xf] %vm2650, %v2529
      %2659 = vst.msk [vmem:[%s310 + $0x20] sm:$0xf] %vm2650, %v2530
      %2660 = vst.msk [vmem:[%s310 + $0x24] sm:$0xf] %vm2650, %v2531
      %2661 = vst.msk [vmem:[%s310 + $0x28] sm:$0xf] %vm2650, %v2532
      %2662 = vst.msk [vmem:[%s310 + $0x2c] sm:$0xf] %vm2650, %v2533
      %2663 = vst.msk [vmem:[%s310 + $0x30] sm:$0xf] %vm2650, %v2534
      %2664 = vst.msk [vmem:[%s310 + $0x34] sm:$0xf] %vm2650, %v2535
      %2665 = vst.msk [vmem:[%s310 + $0x38] sm:$0xf] %vm2650, %v2536
      %2666 = vst.msk [vmem:[%s310 + $0x3c] sm:$0xf] %vm2650, %v2537
      %2667 = vst.msk [vmem:[%s310 + $0x40] sm:$0xf] %vm2650, %v2538
      %2668 = vst.msk [vmem:[%s310 + $0x44] sm:$0xf] %vm2650, %v2539
      %2669 = vst.msk [vmem:[%s310 + $0x48] sm:$0xf] %vm2650, %v2540
      %2670 = vst.msk [vmem:[%s310 + $0x4c] sm:$0xf] %vm2650, %v2541
      %2671 = vst.msk [vmem:[%s310 + $0x50] sm:$0xf] %vm2650, %v2542
      %2672 = vst.msk [vmem:[%s310 + $0x54] sm:$0xf] %vm2650, %v2543
      %2673 = vst.msk [vmem:[%s310 + $0x58] sm:$0xf] %vm2650, %v2544
      %2674 = vst.msk [vmem:[%s310 + $0x5c] sm:$0xf] %vm2650, %v2545
      %2675 = vst.msk [vmem:[%s310 + $0x60] sm:$0xf] %vm2650, %v2546
      %2676 = vst.msk [vmem:[%s310 + $0x64] sm:$0xf] %vm2650, %v2547
      %2677 = vst.msk [vmem:[%s310 + $0x68] sm:$0xf] %vm2650, %v2548
      %2678 = vst.msk [vmem:[%s310 + $0x6c] sm:$0xf] %vm2650, %v2549
      %2679 = vst.msk [vmem:[%s310 + $0x70] sm:$0xf] %vm2650, %v2550
      %2680 = vst.msk [vmem:[%s310 + $0x74] sm:$0xf] %vm2650, %v2551
      %2681 = vst.msk [vmem:[%s310 + $0x78] sm:$0xf] %vm2650, %v2552
      %2682 = vst.msk [vmem:[%s310 + $0x7c] sm:$0xf] %vm2650, %v2553
      %2683 = vst.msk [vmem:[%s310 + $0x80] sm:$0xf] %vm2650, %v2554
      %2684 = vst.msk [vmem:[%s310 + $0x84] sm:$0xf] %vm2650, %v2555
      %2685 = vst.msk [vmem:[%s310 + $0x88] sm:$0xf] %vm2650, %v2556
      %2686 = vst.msk [vmem:[%s310 + $0x8c] sm:$0xf] %vm2650, %v2557
      %2687 = vst.msk [vmem:[%s310 + $0x90] sm:$0xf] %vm2650, %v2558
      %2688 = vst.msk [vmem:[%s310 + $0x94] sm:$0xf] %vm2650, %v2559
      %2689 = vst.msk [vmem:[%s310 + $0x98] sm:$0xf] %vm2650, %v2560
      %2690 = vst.msk [vmem:[%s310 + $0x9c] sm:$0xf] %vm2650, %v2561
      %2691 = vst.msk [vmem:[%s310 + $0xa0] sm:$0xf] %vm2650, %v2562
      %2692 = vst.msk [vmem:[%s310 + $0xa4] sm:$0xf] %vm2650, %v2563
      %2693 = vst.msk [vmem:[%s310 + $0xa8] sm:$0xf] %vm2650, %v2564
      %2694 = vst.msk [vmem:[%s310 + $0xac] sm:$0xf] %vm2650, %v2565
      %2695 = vst.msk [vmem:[%s310 + $0xb0] sm:$0xf] %vm2650, %v2566
      %2696 = vst.msk [vmem:[%s310 + $0xb4] sm:$0xf] %vm2650, %v2567
      %2697 = vst.msk [vmem:[%s310 + $0xb8] sm:$0xf] %vm2650, %v2568
      %2698 = vst.msk [vmem:[%s310 + $0xbc] sm:$0xf] %vm2650, %v2569
      %2699 = vst.msk [vmem:[%s310 + $0xc0] sm:$0xf] %vm2650, %v2570
      %2700 = vst.msk [vmem:[%s310 + $0xc4] sm:$0xf] %vm2650, %v2571
      %2701 = vst.msk [vmem:[%s310 + $0xc8] sm:$0xf] %vm2650, %v2572
      %2702 = vst.msk [vmem:[%s310 + $0xcc] sm:$0xf] %vm2650, %v2573
      %2703 = vst.msk [vmem:[%s310 + $0xd0] sm:$0xf] %vm2650, %v2574
      %2704 = vst.msk [vmem:[%s310 + $0xd4] sm:$0xf] %vm2650, %v2575
      %2705 = vst.msk [vmem:[%s310 + $0xd8] sm:$0xf] %vm2650, %v2576
      %2706 = vst.msk [vmem:[%s310 + $0xdc] sm:$0xf] %vm2650, %v2577
      %2707 = vst.msk [vmem:[%s310 + $0xe0] sm:$0xf] %vm2650, %v2578
      %2708 = vst.msk [vmem:[%s310 + $0xe4] sm:$0xf] %vm2650, %v2579
      %2709 = vst.msk [vmem:[%s310 + $0xe8] sm:$0xf] %vm2650, %v2580
      %2710 = vst.msk [vmem:[%s310 + $0xec] sm:$0xf] %vm2650, %v2581
      %2711 = vst.msk [vmem:[%s310 + $0xf0] sm:$0xf] %vm2650, %v2582
      %2712 = vst.msk [vmem:[%s310 + $0xf4] sm:$0xf] %vm2650, %v2583
      %2713 = vst.msk [vmem:[%s310 + $0xf8] sm:$0xf] %vm2650, %v2584
      %2714 = vst.msk [vmem:[%s310 + $0xfc] sm:$0xf] %vm2650, %v2585
      %2715 = vrot.lane.b32.xlu0 %v2522, 120
      %v2716 = vpop.permute.xlu0 %2715
      %2717 = vrot.lane.b32.xlu0 %v2523, 120
      %v2718 = vpop.permute.xlu0 %2717
      %2719 = vrot.lane.b32.xlu0 %v2524, 120
      %v2720 = vpop.permute.xlu0 %2719
      %2721 = vrot.lane.b32.xlu0 %v2525, 120
      %v2722 = vpop.permute.xlu0 %2721
      %2723 = vrot.lane.b32.xlu0 %v2526, 120
      %v2724 = vpop.permute.xlu0 %2723
      %2725 = vrot.lane.b32.xlu0 %v2527, 120
      %v2726 = vpop.permute.xlu0 %2725
      %2727 = vrot.lane.b32.xlu0 %v2528, 120
      %v2728 = vpop.permute.xlu0 %2727
      %2729 = vrot.lane.b32.xlu0 %v2529, 120
      %v2730 = vpop.permute.xlu0 %2729
      %2731 = vrot.lane.b32.xlu0 %v2530, 120
      %v2732 = vpop.permute.xlu0 %2731
      %2733 = vrot.lane.b32.xlu0 %v2531, 120
      %v2734 = vpop.permute.xlu0 %2733
      %2735 = vrot.lane.b32.xlu0 %v2532, 120
      %v2736 = vpop.permute.xlu0 %2735
      %2737 = vrot.lane.b32.xlu0 %v2533, 120
      %v2738 = vpop.permute.xlu0 %2737
      %2739 = vrot.lane.b32.xlu0 %v2534, 120
      %v2740 = vpop.permute.xlu0 %2739
      %2741 = vrot.lane.b32.xlu0 %v2535, 120
      %v2742 = vpop.permute.xlu0 %2741
      %2743 = vrot.lane.b32.xlu0 %v2536, 120
      %v2744 = vpop.permute.xlu0 %2743
      %2745 = vrot.lane.b32.xlu0 %v2537, 120
      %v2746 = vpop.permute.xlu0 %2745
      %2747 = vrot.lane.b32.xlu0 %v2538, 120
      %v2748 = vpop.permute.xlu0 %2747
      %2749 = vrot.lane.b32.xlu0 %v2539, 120
      %v2750 = vpop.permute.xlu0 %2749
      %2751 = vrot.lane.b32.xlu0 %v2540, 120
      %v2752 = vpop.permute.xlu0 %2751
      %2753 = vrot.lane.b32.xlu0 %v2541, 120
      %v2754 = vpop.permute.xlu0 %2753
      %2755 = vrot.lane.b32.xlu0 %v2542, 120
      %v2756 = vpop.permute.xlu0 %2755
      %2757 = vrot.lane.b32.xlu0 %v2543, 120
      %v2758 = vpop.permute.xlu0 %2757
      %2759 = vrot.lane.b32.xlu0 %v2544, 120
      %v2760 = vpop.permute.xlu0 %2759
      %2761 = vrot.lane.b32.xlu0 %v2545, 120
      %v2762 = vpop.permute.xlu0 %2761
      %2763 = vrot.lane.b32.xlu0 %v2546, 120
      %v2764 = vpop.permute.xlu0 %2763
      %2765 = vrot.lane.b32.xlu0 %v2547, 120
      %v2766 = vpop.permute.xlu0 %2765
      %2767 = vrot.lane.b32.xlu0 %v2548, 120
      %v2768 = vpop.permute.xlu0 %2767
      %2769 = vrot.lane.b32.xlu0 %v2549, 120
      %v2770 = vpop.permute.xlu0 %2769
      %2771 = vrot.lane.b32.xlu0 %v2550, 120
      %v2772 = vpop.permute.xlu0 %2771
      %2773 = vrot.lane.b32.xlu0 %v2551, 120
      %v2774 = vpop.permute.xlu0 %2773
      %2775 = vrot.lane.b32.xlu0 %v2552, 120
      %v2776 = vpop.permute.xlu0 %2775
      %2777 = vrot.lane.b32.xlu0 %v2553, 120
      %v2778 = vpop.permute.xlu0 %2777
      %2779 = vrot.lane.b32.xlu0 %v2554, 120
      %v2780 = vpop.permute.xlu0 %2779
      %2781 = vrot.lane.b32.xlu0 %v2555, 120
      %v2782 = vpop.permute.xlu0 %2781
      %2783 = vrot.lane.b32.xlu0 %v2556, 120
      %v2784 = vpop.permute.xlu0 %2783
      %2785 = vrot.lane.b32.xlu0 %v2557, 120
      %v2786 = vpop.permute.xlu0 %2785
      %2787 = vrot.lane.b32.xlu0 %v2558, 120
      %v2788 = vpop.permute.xlu0 %2787
      %2789 = vrot.lane.b32.xlu0 %v2559, 120
      %v2790 = vpop.permute.xlu0 %2789
      %2791 = vrot.lane.b32.xlu0 %v2560, 120
      %v2792 = vpop.permute.xlu0 %2791
      %2793 = vrot.lane.b32.xlu0 %v2561, 120
      %v2794 = vpop.permute.xlu0 %2793
      %2795 = vrot.lane.b32.xlu0 %v2562, 120
      %v2796 = vpop.permute.xlu0 %2795
      %2797 = vrot.lane.b32.xlu0 %v2563, 120
      %v2798 = vpop.permute.xlu0 %2797
      %2799 = vrot.lane.b32.xlu0 %v2564, 120
      %v2800 = vpop.permute.xlu0 %2799
      %2801 = vrot.lane.b32.xlu0 %v2565, 120
      %v2802 = vpop.permute.xlu0 %2801
      %2803 = vrot.lane.b32.xlu0 %v2566, 120
      %v2804 = vpop.permute.xlu0 %2803
      %2805 = vrot.lane.b32.xlu0 %v2567, 120
      %v2806 = vpop.permute.xlu0 %2805
      %2807 = vrot.lane.b32.xlu0 %v2568, 120
      %v2808 = vpop.permute.xlu0 %2807
      %2809 = vrot.lane.b32.xlu0 %v2569, 120
      %v2810 = vpop.permute.xlu0 %2809
      %2811 = vrot.lane.b32.xlu0 %v2570, 120
      %v2812 = vpop.permute.xlu0 %2811
      %2813 = vrot.lane.b32.xlu0 %v2571, 120
      %v2814 = vpop.permute.xlu0 %2813
      %2815 = vrot.lane.b32.xlu0 %v2572, 120
      %v2816 = vpop.permute.xlu0 %2815
      %2817 = vrot.lane.b32.xlu0 %v2573, 120
      %v2818 = vpop.permute.xlu0 %2817
      %2819 = vrot.lane.b32.xlu0 %v2574, 120
      %v2820 = vpop.permute.xlu0 %2819
      %2821 = vrot.lane.b32.xlu0 %v2575, 120
      %v2822 = vpop.permute.xlu0 %2821
      %2823 = vrot.lane.b32.xlu0 %v2576, 120
      %v2824 = vpop.permute.xlu0 %2823
      %2825 = vrot.lane.b32.xlu0 %v2577, 120
      %v2826 = vpop.permute.xlu0 %2825
      %2827 = vrot.lane.b32.xlu0 %v2578, 120
      %v2828 = vpop.permute.xlu0 %2827
      %2829 = vrot.lane.b32.xlu0 %v2579, 120
      %v2830 = vpop.permute.xlu0 %2829
      %2831 = vrot.lane.b32.xlu0 %v2580, 120
      %v2832 = vpop.permute.xlu0 %2831
      %2833 = vrot.lane.b32.xlu0 %v2581, 120
      %v2834 = vpop.permute.xlu0 %2833
      %2835 = vrot.lane.b32.xlu0 %v2582, 120
      %v2836 = vpop.permute.xlu0 %2835
      %2837 = vrot.lane.b32.xlu0 %v2583, 120
      %v2838 = vpop.permute.xlu0 %2837
      %2839 = vrot.lane.b32.xlu0 %v2584, 120
      %v2840 = vpop.permute.xlu0 %2839
      %2841 = vrot.lane.b32.xlu0 %v2585, 120
      %v2842 = vpop.permute.xlu0 %2841
      %2907 = vst.msk [vmem:[%s316] sm:$0xf] %vm2650, %v2716
      %2908 = vst.msk [vmem:[%s316 + $0x4] sm:$0xf] %vm2650, %v2718
      %2909 = vst.msk [vmem:[%s316 + $0x8] sm:$0xf] %vm2650, %v2720
      %2910 = vst.msk [vmem:[%s316 + $0xc] sm:$0xf] %vm2650, %v2722
      %2911 = vst.msk [vmem:[%s316 + $0x10] sm:$0xf] %vm2650, %v2724
      %2912 = vst.msk [vmem:[%s316 + $0x14] sm:$0xf] %vm2650, %v2726
      %2913 = vst.msk [vmem:[%s316 + $0x18] sm:$0xf] %vm2650, %v2728
      %2914 = vst.msk [vmem:[%s316 + $0x1c] sm:$0xf] %vm2650, %v2730
      %2915 = vst.msk [vmem:[%s316 + $0x20] sm:$0xf] %vm2650, %v2732
      %2916 = vst.msk [vmem:[%s316 + $0x24] sm:$0xf] %vm2650, %v2734
      %2917 = vst.msk [vmem:[%s316 + $0x28] sm:$0xf] %vm2650, %v2736
      %2918 = vst.msk [vmem:[%s316 + $0x2c] sm:$0xf] %vm2650, %v2738
      %2919 = vst.msk [vmem:[%s316 + $0x30] sm:$0xf] %vm2650, %v2740
      %2920 = vst.msk [vmem:[%s316 + $0x34] sm:$0xf] %vm2650, %v2742
      %2921 = vst.msk [vmem:[%s316 + $0x38] sm:$0xf] %vm2650, %v2744
      %2922 = vst.msk [vmem:[%s316 + $0x3c] sm:$0xf] %vm2650, %v2746
      %2923 = vst.msk [vmem:[%s316 + $0x40] sm:$0xf] %vm2650, %v2748
      %2924 = vst.msk [vmem:[%s316 + $0x44] sm:$0xf] %vm2650, %v2750
      %2925 = vst.msk [vmem:[%s316 + $0x48] sm:$0xf] %vm2650, %v2752
      %2926 = vst.msk [vmem:[%s316 + $0x4c] sm:$0xf] %vm2650, %v2754
      %2927 = vst.msk [vmem:[%s316 + $0x50] sm:$0xf] %vm2650, %v2756
      %2928 = vst.msk [vmem:[%s316 + $0x54] sm:$0xf] %vm2650, %v2758
      %2929 = vst.msk [vmem:[%s316 + $0x58] sm:$0xf] %vm2650, %v2760
      %2930 = vst.msk [vmem:[%s316 + $0x5c] sm:$0xf] %vm2650, %v2762
      %2931 = vst.msk [vmem:[%s316 + $0x60] sm:$0xf] %vm2650, %v2764
      %2932 = vst.msk [vmem:[%s316 + $0x64] sm:$0xf] %vm2650, %v2766
      %2933 = vst.msk [vmem:[%s316 + $0x68] sm:$0xf] %vm2650, %v2768
      %2934 = vst.msk [vmem:[%s316 + $0x6c] sm:$0xf] %vm2650, %v2770
      %2935 = vst.msk [vmem:[%s316 + $0x70] sm:$0xf] %vm2650, %v2772
      %2936 = vst.msk [vmem:[%s316 + $0x74] sm:$0xf] %vm2650, %v2774
      %2937 = vst.msk [vmem:[%s316 + $0x78] sm:$0xf] %vm2650, %v2776
      %2938 = vst.msk [vmem:[%s316 + $0x7c] sm:$0xf] %vm2650, %v2778
      %2939 = vst.msk [vmem:[%s316 + $0x80] sm:$0xf] %vm2650, %v2780
      %2940 = vst.msk [vmem:[%s316 + $0x84] sm:$0xf] %vm2650, %v2782
      %2941 = vst.msk [vmem:[%s316 + $0x88] sm:$0xf] %vm2650, %v2784
      %2942 = vst.msk [vmem:[%s316 + $0x8c] sm:$0xf] %vm2650, %v2786
      %2943 = vst.msk [vmem:[%s316 + $0x90] sm:$0xf] %vm2650, %v2788
      %2944 = vst.msk [vmem:[%s316 + $0x94] sm:$0xf] %vm2650, %v2790
      %2945 = vst.msk [vmem:[%s316 + $0x98] sm:$0xf] %vm2650, %v2792
      %2946 = vst.msk [vmem:[%s316 + $0x9c] sm:$0xf] %vm2650, %v2794
      %2947 = vst.msk [vmem:[%s316 + $0xa0] sm:$0xf] %vm2650, %v2796
      %2948 = vst.msk [vmem:[%s316 + $0xa4] sm:$0xf] %vm2650, %v2798
      %2949 = vst.msk [vmem:[%s316 + $0xa8] sm:$0xf] %vm2650, %v2800
      %2950 = vst.msk [vmem:[%s316 + $0xac] sm:$0xf] %vm2650, %v2802
      %2951 = vst.msk [vmem:[%s316 + $0xb0] sm:$0xf] %vm2650, %v2804
      %2952 = vst.msk [vmem:[%s316 + $0xb4] sm:$0xf] %vm2650, %v2806
      %2953 = vst.msk [vmem:[%s316 + $0xb8] sm:$0xf] %vm2650, %v2808
      %2954 = vst.msk [vmem:[%s316 + $0xbc] sm:$0xf] %vm2650, %v2810
      %2955 = vst.msk [vmem:[%s316 + $0xc0] sm:$0xf] %vm2650, %v2812
      %2956 = vst.msk [vmem:[%s316 + $0xc4] sm:$0xf] %vm2650, %v2814
      %2957 = vst.msk [vmem:[%s316 + $0xc8] sm:$0xf] %vm2650, %v2816
      %2958 = vst.msk [vmem:[%s316 + $0xcc] sm:$0xf] %vm2650, %v2818
      %2959 = vst.msk [vmem:[%s316 + $0xd0] sm:$0xf] %vm2650, %v2820
      %2960 = vst.msk [vmem:[%s316 + $0xd4] sm:$0xf] %vm2650, %v2822
      %2961 = vst.msk [vmem:[%s316 + $0xd8] sm:$0xf] %vm2650, %v2824
      %2962 = vst.msk [vmem:[%s316 + $0xdc] sm:$0xf] %vm2650, %v2826
      %2963 = vst.msk [vmem:[%s316 + $0xe0] sm:$0xf] %vm2650, %v2828
      %2964 = vst.msk [vmem:[%s316 + $0xe4] sm:$0xf] %vm2650, %v2830
      %2965 = vst.msk [vmem:[%s316 + $0xe8] sm:$0xf] %vm2650, %v2832
      %2966 = vst.msk [vmem:[%s316 + $0xec] sm:$0xf] %vm2650, %v2834
      %2967 = vst.msk [vmem:[%s316 + $0xf0] sm:$0xf] %vm2650, %v2836
      %2968 = vst.msk [vmem:[%s316 + $0xf4] sm:$0xf] %vm2650, %v2838
      %2969 = vst.msk [vmem:[%s316 + $0xf8] sm:$0xf] %vm2650, %v2840
      %2970 = vst.msk [vmem:[%s316 + $0xfc] sm:$0xf] %vm2650, %v2842
      %s2971 = smul.u32 64, %s19
      %p2972 = scmp.lt.s32.totalorder %s2971, 255
      %s2973 = scalar_select %p2972, %s2971, 255
      %s2974 = smul.addr %s2973, 4
      %s2975 = scalar_lea.vmem %s6, %s2974
      %s2976 = smul.u32 64, %s19
      %p2977 = scmp.lt.s32.totalorder %s2976, 255
      %s2978 = scalar_select %p2977, %s2976, 255
      %s2979 = smul.addr %s2978, 4
      %s2980 = scalar_lea.vmem %s7, %s2979
      // Predicated region
      $region45: #{tpu_custom_call.1} parent=43 // pred_check
        %p2981 = pneg %p173
      $region46: #{tpu_custom_call.1} parent=43 // pred_check_branch
        %2983 = sbr.rel (%p2981) target = $region48
      $region47: #{tpu_custom_call.1} parent=43 // pred_region
        %s2984 = smul.u32 64, %s19
      $region48: #{tpu_custom_call.1} parent=43 // pred_fallthru
        _
      // Predicated region
      $region49: #{tpu_custom_call.1} parent=43 // pred_check
        %p2985 = pneg %p199
      $region50: #{tpu_custom_call.1} parent=43 // pred_check_branch
        %2987 = sbr.rel (%p2985) target = $region52
      $region51: #{tpu_custom_call.1} parent=43 // pred_region
        %s2988 = smul.u32 64, %s19
      $region52: #{tpu_custom_call.1} parent=43 // pred_fallthru
        _
    $region44: #{tpu_custom_call.1} parent=5 // pred_fallthru
      _
    %p2989 = scmp.le.s32.totalorder 2, %s14
    // Predicated region
    $region53: #{tpu_custom_call.1} parent=5 // pred_check
      %p2990 = pneg %p2989
    $region54: #{tpu_custom_call.1} parent=5 // pred_check_branch
      %2992 = sbr.rel (%p2990) target = $region56
    $region55: #{tpu_custom_call.1} parent=5 // pred_region
      %s2993 = ssub.s32 %s14, 2
      // Predicated region
      $region57: #{tpu_custom_call.1} parent=55 // pred_check
        %p2994 = pneg %p179
      $region58: #{tpu_custom_call.1} parent=55 // pred_check_branch
        %2996 = sbr.rel (%p2994) target = $region60
      $region59: #{tpu_custom_call.1} parent=55 // pred_region
        %s2997 = smul.u32 64, %s20
        %p2998 = scmp.lt.s32.totalorder %s2997, 255
        %s2999 = scalar_select %p2998, %s2997, 255
        %s3000 = smul.addr %s2999, 4
        %s3001 = scalar_lea.vmem %s6, %s3000
      $region60: #{tpu_custom_call.1} parent=55 // pred_fallthru
        _
      // Predicated region
      $region61: #{tpu_custom_call.1} parent=55 // pred_check
        %p3002 = pneg %p205
      $region62: #{tpu_custom_call.1} parent=55 // pred_check_branch
        %3004 = sbr.rel (%p3002) target = $region64
      $region63: #{tpu_custom_call.1} parent=55 // pred_region
        %s3005 = smul.u32 64, %s20
        %p3006 = scmp.lt.s32.totalorder %s3005, 255
        %s3007 = scalar_select %p3006, %s3005, 255
        %s3008 = smul.addr %s3007, 4
        %s3009 = scalar_lea.vmem %s7, %s3008
      $region64: #{tpu_custom_call.1} parent=55 // pred_fallthru
        _
    $region56: #{tpu_custom_call.1} parent=5 // pred_fallthru
      _
  $region6: #{tpu_custom_call.1} parent=0 // loop_footer
    %s18 = sadd.s32 1, %s14
  $region7: #{tpu_custom_call.1} parent=0 // loop_footer_branch
    %13 = sbr.rel target = $region3
  $region8: #{tpu_custom_call.1} parent=0 // loop_exit
    _

</llo_original>
